<compile_context>
chip_gen: v6e
topology: v6e:2x2x1
jax: 0.10.0
libtpu: 0.0.40
codegen_flags: <defaults>
</compile_context>

<pallas_src>
import functools

import jax
import jax.numpy as jnp
import numpy as np
from jax.experimental import pallas as pl
from jax.experimental.pallas import tpu as pltpu


# ---------------------------------------------------------------------------
# Pallas kernel (whole InvertedResidual block, stride-1 spatial grid).
# ---------------------------------------------------------------------------
def _make_kernel(has_expand, use_res, H, W):
    def kernel(*refs):
        if has_expand:
            (x_ref, we_ref, se_ref, be_ref,
             wd_ref, sd_ref, bd_ref,
             wp_ref, sp_ref, bp_ref,
             out_ref, hp_ref) = refs
        else:
            (x_ref,
             wd_ref, sd_ref, bd_ref,
             wp_ref, sp_ref, bp_ref,
             out_ref, hp_ref) = refs

        x = x_ref[0]                                     # (H, W, C_in) f32
        c_in = x.shape[-1]
        x2 = x.reshape(H * W, c_in)                      # leading-dim merge, lane dim unchanged

        if has_expand:
            # 1x1 expand conv on the MXU: bf16 operands, f32 accumulation.
            h = jax.lax.dot_general(
                x2.astype(jnp.bfloat16), we_ref[...],
                (((1,), (0,)), ((), ())),
                preferred_element_type=jnp.float32)      # (N, hidden)
            h = h * se_ref[...] + be_ref[...]            # folded BN1
            h = jnp.clip(h, 0.0, 6.0)                    # ReLU6
        else:
            h = x2                                       # expand_ratio == 1: depthwise acts on x

        hidden = h.shape[-1]

        # Zero-padded halo copy of the activation for the 3x3 depthwise taps.
        hp_ref[...] = jnp.zeros(hp_ref.shape, hp_ref.dtype)
        hp_ref[1:H + 1, 1:W + 1, :] = h.reshape(H, W, hidden)

        # Depthwise 3x3 (stride-1 grid): 9 shifted per-channel multiply-accumulates (VPU).
        acc = jnp.zeros((H, W, hidden), jnp.float32)
        for dy in range(3):
            for dx in range(3):
                tap = wd_ref[dy * 3 + dx][None, None, :]          # (1, 1, hidden)
                acc = acc + tap * hp_ref[dy:dy + H, dx:dx + W, :]
        d = acc * sd_ref[...][None] + bd_ref[...][None]            # folded BN2
        d = jnp.clip(d, 0.0, 6.0)                                  # ReLU6

        # 1x1 projection conv on the MXU: bf16 operands, f32 accumulation.
        y = jax.lax.dot_general(
            d.reshape(H * W, hidden).astype(jnp.bfloat16), wp_ref[...],
            (((1,), (0,)), ((), ())),
            preferred_element_type=jnp.float32)          # (N, C_out)
        y = y * sp_ref[...] + bp_ref[...]                # folded BN3 (no activation)
        if use_res:
            y = y + x2                                   # residual kept in f32

        out_ref[0] = y.reshape(H, W, y.shape[-1]).astype(out_ref.dtype)

    return kernel


# ---------------------------------------------------------------------------
# Wrapper
# ---------------------------------------------------------------------------
def _fold_bn(bn, eps=1e-5):
    # TODO(synk): training-mode BatchNorm (batch statistics) is not implemented;
    # eval-mode running stats are folded into a per-channel scale/shift.
    scale = bn["gamma"] / jnp.sqrt(bn["var"] + eps)
    shift = bn["beta"] - bn["mean"] * scale
    return scale.astype(jnp.float32), shift.astype(jnp.float32)


def _full_spec(shape):
    zeros = (0,) * len(shape)
    return pl.BlockSpec(shape, lambda b, _z=zeros: _z)


def inverted_residual_forward(params, x, *, stride, expand_ratio):
    """x: (B, C_in, H, W) NCHW, like the PyTorch module.  Returns NCHW output."""
    assert stride in (1, 2)
    B, C_in, H, W = x.shape
    has_expand = expand_ratio != 1
    hidden = params["w_dw"].shape[0]
    C_out = params["w_pw"].shape[0]
    use_res = (stride == 1) and (C_in == C_out)

    # NCHW -> NHWC once at the boundary (could be elided in an NHWC pipeline).
    x_nhwc = jnp.transpose(x, (0, 2, 3, 1)).astype(jnp.float32)    # (B, H, W, C_in)

    # Fold BN + repack weights into lane-dense, matmul-friendly layouts.
    s_dw, b_dw = _fold_bn(params["bn_dw"])
    s_pw, b_pw = _fold_bn(params["bn_pw"])
    w_dw = jnp.transpose(params["w_dw"][:, 0], (1, 2, 0)).reshape(9, hidden)        # (9, hidden) f32
    w_pw = jnp.transpose(params["w_pw"][:, :, 0, 0], (1, 0)).astype(jnp.bfloat16)   # (hidden, C_out)

    args = [x_nhwc]
    in_specs = [pl.BlockSpec((1, H, W, C_in), lambda b: (b, 0, 0, 0))]

    if has_expand:
        w_exp = jnp.transpose(params["w_exp"][:, :, 0, 0], (1, 0)).astype(jnp.bfloat16)  # (C_in, hidden)
        s_exp, b_exp = _fold_bn(params["bn_exp"])
        args += [w_exp, s_exp.reshape(1, hidden), b_exp.reshape(1, hidden)]
        in_specs += [_full_spec((C_in, hidden)), _full_spec((1, hidden)), _full_spec((1, hidden))]

    args += [w_dw, s_dw.reshape(1, hidden), b_dw.reshape(1, hidden),
             w_pw, s_pw.reshape(1, C_out), b_pw.reshape(1, C_out)]
    in_specs += [_full_spec((9, hidden)), _full_spec((1, hidden)), _full_spec((1, hidden)),
                 _full_spec((hidden, C_out)), _full_spec((1, C_out)), _full_spec((1, C_out))]

    N = H * W
    flops = 2 * B * N * hidden * (9 + C_out)
    if has_expand:
        flops += 2 * B * N * C_in * hidden
    bytes_accessed = 4 * B * N * (C_in + C_out) + 4 * (9 * hidden + 8 * hidden + 4 * C_out) \
        + 2 * (hidden * C_out) + (2 * C_in * hidden if has_expand else 0)

    kernel = _make_kernel(has_expand, use_res, H, W)

    out_nhwc = pl.pallas_call(
        kernel,
        grid=(B,),
        in_specs=in_specs,
        out_specs=pl.BlockSpec((1, H, W, C_out), lambda b: (b, 0, 0, 0)),
        out_shape=jax.ShapeDtypeStruct((B, H, W, C_out), jnp.float32),
        scratch_shapes=[pltpu.VMEM((H + 2, W + 2, hidden), jnp.float32)],
        compiler_params=pltpu.CompilerParams(dimension_semantics=("parallel",)),
        cost_estimate=pl.CostEstimate(flops=int(flops), transcendentals=0,
                                      bytes_accessed=int(bytes_accessed)),
    )(*args)

    if stride == 2:
        # stride-2 conv == stride-1 conv sampled at even positions; the pointwise
        # projection/BN commute with spatial subsampling, so subsample the output.
        # TODO(synk): a dedicated stride-2 kernel would avoid the 4x extra spatial work.
        out_nhwc = out_nhwc[:, ::2, ::2, :]

    return jnp.transpose(out_nhwc, (0, 3, 1, 2))                   # back to NCHW


# ---------------------------------------------------------------------------
# Pure-JAX reference (mirrors the PyTorch module, eval-mode BN).
# ---------------------------------------------------------------------------
def _relu6(x):
    return jnp.clip(x, 0.0, 6.0)


def _bn_ref(x, bn, eps=1e-5):
    scale = bn["gamma"] / jnp.sqrt(bn["var"] + eps)
    shift = bn["beta"] - bn["mean"] * scale
    return x * scale[None, :, None, None] + shift[None, :, None, None]


def _conv1x1_ref(x, w):
    return jax.lax.conv_general_dilated(
        x, w, window_strides=(1, 1), padding=[(0, 0), (0, 0)],
        dimension_numbers=("NCHW", "OIHW", "NCHW"))


def _dwconv3x3_ref(x, w, stride):
    return jax.lax.conv_general_dilated(
        x, w, window_strides=(stride, stride), padding=[(1, 1), (1, 1)],
        dimension_numbers=("NCHW", "OIHW", "NCHW"),
        feature_group_count=x.shape[1])


def inverted_residual_ref(params, x, *, stride, expand_ratio):
    inp = x.shape[1]
    h = x
    if expand_ratio != 1:
        h = _relu6(_bn_ref(_conv1x1_ref(h, params["w_exp"]), params["bn_exp"]))
    d = _relu6(_bn_ref(_dwconv3x3_ref(h, params["w_dw"], stride), params["bn_dw"]))
    y = _bn_ref(_conv1x1_ref(d, params["w_pw"]), params["bn_pw"])
    if stride == 1 and inp == y.shape[1]:
        y = y + x
    return y


# ---------------------------------------------------------------------------
# Deterministic synthetic parameters (PyTorch-layout weights).
# ---------------------------------------------------------------------------
def _bn_init(key, c):
    k1, k2, k3, k4 = jax.random.split(key, 4)
    return {
        "gamma": 1.0 + 0.1 * jax.random.normal(k1, (c,), jnp.float32),
        "beta": 0.1 * jax.random.normal(k2, (c,), jnp.float32),
        "mean": 0.1 * jax.random.normal(k3, (c,), jnp.float32),
        "var": jax.random.uniform(k4, (c,), jnp.float32, 0.5, 1.5),
    }


def init_params(key, inp, oup, expand_ratio):
    hidden = int(round(inp * expand_ratio))
    ks = jax.random.split(key, 6)
    s = 0.2
    p = {
        "w_dw": s * jax.random.normal(ks[0], (hidden, 1, 3, 3), jnp.float32),
        "bn_dw": _bn_init(ks[1], hidden),
        "w_pw": s * jax.random.normal(ks[2], (oup, hidden, 1, 1), jnp.float32),
        "bn_pw": _bn_init(ks[3], oup),
    }
    if expand_ratio != 1:
        p["w_exp"] = s * jax.random.normal(ks[4], (hidden, inp, 1, 1), jnp.float32)
        p["bn_exp"] = _bn_init(ks[5], inp * 0 + hidden)
    return p


if __name__ == "__main__":
    key = jax.random.PRNGKey(0)
    kx, kA, kB, kC = jax.random.split(key, 4)

    B, C, Hs, Ws = 2, 16, 16, 16
    x = jax.random.normal(kx, (B, C, Hs, Ws), jnp.float32)

    # Case A: expand_ratio=6, stride=1, inp==oup  -> residual path, full expand pipeline.
    pA = init_params(kA, C, C, 6)
    outA = jax.block_until_ready(inverted_residual_forward(pA, x, stride=1, expand_ratio=6))
    refA = inverted_residual_ref(pA, x, stride=1, expand_ratio=6)
    assert outA.shape == (B, C, Hs, Ws)
    np.testing.assert_allclose(np.asarray(outA), np.asarray(refA), rtol=5e-2, atol=5e-2)

    # Case B: expand_ratio=1, stride=1 -> depthwise-first variant with residual.
    pB = init_params(kB, C, C, 1)
    outB = jax.block_until_ready(inverted_residual_forward(pB, x, stride=1, expand_ratio=1))
    refB = inverted_residual_ref(pB, x, stride=1, expand_ratio=1)
    np.testing.assert_allclose(np.asarray(outB), np.asarray(refB), rtol=5e-2, atol=5e-2)

    # Case C: expand_ratio=6, stride=2, oup != inp -> downsampling, no residual.
    pC = init_params(kC, C, 24, 6)
    outC = jax.block_until_ready(inverted_residual_forward(pC, x, stride=2, expand_ratio=6))
    refC = inverted_residual_ref(pC, x, stride=2, expand_ratio=6)
    assert outC.shape == (B, 24, Hs // 2, Ws // 2)
    np.testing.assert_allclose(np.asarray(outC), np.asarray(refC), rtol=5e-2, atol=5e-2)

    print("KERNEL_OK")
</pallas_src>

<mosaic_0001>
module attributes {stable_mosaic.version = 11 : i64} {
  func.func @kernel(%arg0: i32, %arg1: memref<1x16x16x16xf32, #tpu.memory_space<vmem>>, %arg2: memref<16x96xbf16, #tpu.memory_space<vmem>>, %arg3: memref<1x96xf32, #tpu.memory_space<vmem>>, %arg4: memref<1x96xf32, #tpu.memory_space<vmem>>, %arg5: memref<9x96xf32, #tpu.memory_space<vmem>>, %arg6: memref<1x96xf32, #tpu.memory_space<vmem>>, %arg7: memref<1x96xf32, #tpu.memory_space<vmem>>, %arg8: memref<96x16xbf16, #tpu.memory_space<vmem>>, %arg9: memref<1x16xf32, #tpu.memory_space<vmem>>, %arg10: memref<1x16xf32, #tpu.memory_space<vmem>>, %arg11: memref<1x16x16x16xf32, #tpu.memory_space<vmem>>, %arg12: memref<18x18x96xf32, #tpu.memory_space<vmem>>) attributes {dimension_semantics = [#tpu.dimension_semantics<parallel>], iteration_bounds = array<i64: 2>, scalar_prefetch = 0 : i64, scratch_operands = 1 : i64, tpu.core_type = #tpu.core_type<tc>, window_params = [{transform_indices = @transform_0, window_bounds = array<i64: 1, 16, 16, 16>}, {pipeline_mode = #tpu.pipeline_mode<synchronous>, transform_indices = @transform_1, window_bounds = array<i64: 16, 96>}, {pipeline_mode = #tpu.pipeline_mode<synchronous>, transform_indices = @transform_2, window_bounds = array<i64: 1, 96>}, {pipeline_mode = #tpu.pipeline_mode<synchronous>, transform_indices = @transform_3, window_bounds = array<i64: 1, 96>}, {pipeline_mode = #tpu.pipeline_mode<synchronous>, transform_indices = @transform_4, window_bounds = array<i64: 9, 96>}, {pipeline_mode = #tpu.pipeline_mode<synchronous>, transform_indices = @transform_5, window_bounds = array<i64: 1, 96>}, {pipeline_mode = #tpu.pipeline_mode<synchronous>, transform_indices = @transform_6, window_bounds = array<i64: 1, 96>}, {pipeline_mode = #tpu.pipeline_mode<synchronous>, transform_indices = @transform_7, window_bounds = array<i64: 96, 16>}, {pipeline_mode = #tpu.pipeline_mode<synchronous>, transform_indices = @transform_8, window_bounds = array<i64: 1, 16>}, {pipeline_mode = #tpu.pipeline_mode<synchronous>, transform_indices = @transform_9, window_bounds = array<i64: 1, 16>}, {transform_indices = @transform_10, window_bounds = array<i64: 1, 16, 16, 16>}]} {
    %c0 = arith.constant 0 : index
    %c0_0 = arith.constant 0 : index
    %c0_1 = arith.constant 0 : index
    %c0_2 = arith.constant 0 : index
    %0 = vector.load %arg1[%c0, %c0_0, %c0_1, %c0_2] : memref<1x16x16x16xf32, #tpu.memory_space<vmem>>, vector<1x16x16x16xf32>
    %1 = vector.shape_cast %0 : vector<1x16x16x16xf32> to vector<16x16x16xf32>
    %2 = vector.shape_cast %1 : vector<16x16x16xf32> to vector<256x16xf32>
    %3 = arith.truncf %2 : vector<256x16xf32> to vector<256x16xbf16>
    %c0_3 = arith.constant 0 : index
    %c0_4 = arith.constant 0 : index
    %4 = vector.load %arg2[%c0_3, %c0_4] : memref<16x96xbf16, #tpu.memory_space<vmem>>, vector<16x96xbf16>
    %cst = arith.constant dense<0.000000e+00> : vector<256x96xf32>
    %5 = tpu.matmul %3, %4, %cst {dimension_numbers = #tpu.dot_dimension_numbers<[1], [0], [0], [1], [0, 0, 1, 1], [], []>} : vector<256x16xbf16>, vector<16x96xbf16>, vector<256x96xf32> -> vector<256x96xf32>
    %c0_5 = arith.constant 0 : index
    %c0_6 = arith.constant 0 : index
    %6 = vector.load %arg3[%c0_5, %c0_6] : memref<1x96xf32, #tpu.memory_space<vmem>>, vector<1x96xf32>
    %7 = vector.broadcast %6 : vector<1x96xf32> to vector<256x96xf32>
    %8 = arith.mulf %5, %7 : vector<256x96xf32>
    %c0_7 = arith.constant 0 : index
    %c0_8 = arith.constant 0 : index
    %9 = vector.load %arg4[%c0_7, %c0_8] : memref<1x96xf32, #tpu.memory_space<vmem>>, vector<1x96xf32>
    %10 = vector.broadcast %9 : vector<1x96xf32> to vector<256x96xf32>
    %11 = arith.addf %8, %10 : vector<256x96xf32>
    %cst_9 = arith.constant 0.000000e+00 : f32
    %cst_10 = arith.constant 6.000000e+00 : f32
    %12 = vector.broadcast %cst_9 : f32 to vector<256x96xf32>
    %13 = arith.maximumf %12, %11 : vector<256x96xf32>
    %14 = vector.broadcast %cst_10 : f32 to vector<256x96xf32>
    %15 = arith.minimumf %14, %13 : vector<256x96xf32>
    %cst_11 = arith.constant 0.000000e+00 : f32
    %16 = vector.broadcast %cst_11 : f32 to vector<18x18x96xf32>
    %c0_12 = arith.constant 0 : index
    %c0_13 = arith.constant 0 : index
    %c0_14 = arith.constant 0 : index
    %17 = vector.load %arg12[%c0_12, %c0_13, %c0_14] : memref<18x18x96xf32, #tpu.memory_space<vmem>>, vector<18x18x96xf32>
    tpu.vector_store %arg12[%c0_12, %c0_13, %c0_14], %16 {strides = array<i32>} : memref<18x18x96xf32, #tpu.memory_space<vmem>>, vector<18x18x96xf32>,
    %18 = vector.shape_cast %15 : vector<256x96xf32> to vector<16x16x96xf32>
    %c1 = arith.constant 1 : index
    %c1_15 = arith.constant 1 : index
    %c0_16 = arith.constant 0 : index
    %19 = vector.load %arg12[%c1, %c1_15, %c0_16] : memref<18x18x96xf32, #tpu.memory_space<vmem>>, vector<16x16x96xf32>
    tpu.vector_store %arg12[%c1, %c1_15, %c0_16], %18 {strides = array<i32>} : memref<18x18x96xf32, #tpu.memory_space<vmem>>, vector<16x16x96xf32>,
    %cst_17 = arith.constant 0.000000e+00 : f32
    %20 = vector.broadcast %cst_17 : f32 to vector<16x16x96xf32>
    %c0_18 = arith.constant 0 : index
    %c0_19 = arith.constant 0 : index
    %21 = vector.load %arg5[%c0_18, %c0_19] : memref<9x96xf32, #tpu.memory_space<vmem>>, vector<1x96xf32>
    %22 = vector.shape_cast %21 : vector<1x96xf32> to vector<96xf32>
    %23 = vector.shape_cast %22 : vector<96xf32> to vector<1x1x96xf32>
    %c0_20 = arith.constant 0 : index
    %c0_21 = arith.constant 0 : index
    %c0_22 = arith.constant 0 : index
    %24 = vector.load %arg12[%c0_20, %c0_21, %c0_22] : memref<18x18x96xf32, #tpu.memory_space<vmem>>, vector<16x16x96xf32>
    %25 = vector.broadcast %23 : vector<1x1x96xf32> to vector<16x16x96xf32>
    %26 = arith.mulf %25, %24 : vector<16x16x96xf32>
    %27 = arith.addf %20, %26 : vector<16x16x96xf32>
    %c1_23 = arith.constant 1 : index
    %c0_24 = arith.constant 0 : index
    %28 = vector.load %arg5[%c1_23, %c0_24] : memref<9x96xf32, #tpu.memory_space<vmem>>, vector<1x96xf32>
    %29 = vector.shape_cast %28 : vector<1x96xf32> to vector<96xf32>
    %30 = vector.shape_cast %29 : vector<96xf32> to vector<1x1x96xf32>
    %c0_25 = arith.constant 0 : index
    %c1_26 = arith.constant 1 : index
    %c0_27 = arith.constant 0 : index
    %31 = vector.load %arg12[%c0_25, %c1_26, %c0_27] : memref<18x18x96xf32, #tpu.memory_space<vmem>>, vector<16x16x96xf32>
    %32 = vector.broadcast %30 : vector<1x1x96xf32> to vector<16x16x96xf32>
    %33 = arith.mulf %32, %31 : vector<16x16x96xf32>
    %34 = arith.addf %27, %33 : vector<16x16x96xf32>
    %c2 = arith.constant 2 : index
    %c0_28 = arith.constant 0 : index
    %35 = vector.load %arg5[%c2, %c0_28] : memref<9x96xf32, #tpu.memory_space<vmem>>, vector<1x96xf32>
    %36 = vector.shape_cast %35 : vector<1x96xf32> to vector<96xf32>
    %37 = vector.shape_cast %36 : vector<96xf32> to vector<1x1x96xf32>
    %c0_29 = arith.constant 0 : index
    %c2_30 = arith.constant 2 : index
    %c0_31 = arith.constant 0 : index
    %38 = vector.load %arg12[%c0_29, %c2_30, %c0_31] : memref<18x18x96xf32, #tpu.memory_space<vmem>>, vector<16x16x96xf32>
    %39 = vector.broadcast %37 : vector<1x1x96xf32> to vector<16x16x96xf32>
    %40 = arith.mulf %39, %38 : vector<16x16x96xf32>
    %41 = arith.addf %34, %40 : vector<16x16x96xf32>
    %c3 = arith.constant 3 : index
    %c0_32 = arith.constant 0 : index
    %42 = vector.load %arg5[%c3, %c0_32] : memref<9x96xf32, #tpu.memory_space<vmem>>, vector<1x96xf32>
    %43 = vector.shape_cast %42 : vector<1x96xf32> to vector<96xf32>
    %44 = vector.shape_cast %43 : vector<96xf32> to vector<1x1x96xf32>
    %c1_33 = arith.constant 1 : index
    %c0_34 = arith.constant 0 : index
    %c0_35 = arith.constant 0 : index
    %45 = vector.load %arg12[%c1_33, %c0_34, %c0_35] : memref<18x18x96xf32, #tpu.memory_space<vmem>>, vector<16x16x96xf32>
    %46 = vector.broadcast %44 : vector<1x1x96xf32> to vector<16x16x96xf32>
    %47 = arith.mulf %46, %45 : vector<16x16x96xf32>
    %48 = arith.addf %41, %47 : vector<16x16x96xf32>
    %c4 = arith.constant 4 : index
    %c0_36 = arith.constant 0 : index
    %49 = vector.load %arg5[%c4, %c0_36] : memref<9x96xf32, #tpu.memory_space<vmem>>, vector<1x96xf32>
    %50 = vector.shape_cast %49 : vector<1x96xf32> to vector<96xf32>
    %51 = vector.shape_cast %50 : vector<96xf32> to vector<1x1x96xf32>
    %c1_37 = arith.constant 1 : index
    %c1_38 = arith.constant 1 : index
    %c0_39 = arith.constant 0 : index
    %52 = vector.load %arg12[%c1_37, %c1_38, %c0_39] : memref<18x18x96xf32, #tpu.memory_space<vmem>>, vector<16x16x96xf32>
    %53 = vector.broadcast %51 : vector<1x1x96xf32> to vector<16x16x96xf32>
    %54 = arith.mulf %53, %52 : vector<16x16x96xf32>
    %55 = arith.addf %48, %54 : vector<16x16x96xf32>
    %c5 = arith.constant 5 : index
    %c0_40 = arith.constant 0 : index
    %56 = vector.load %arg5[%c5, %c0_40] : memref<9x96xf32, #tpu.memory_space<vmem>>, vector<1x96xf32>
    %57 = vector.shape_cast %56 : vector<1x96xf32> to vector<96xf32>
    %58 = vector.shape_cast %57 : vector<96xf32> to vector<1x1x96xf32>
    %c1_41 = arith.constant 1 : index
    %c2_42 = arith.constant 2 : index
    %c0_43 = arith.constant 0 : index
    %59 = vector.load %arg12[%c1_41, %c2_42, %c0_43] : memref<18x18x96xf32, #tpu.memory_space<vmem>>, vector<16x16x96xf32>
    %60 = vector.broadcast %58 : vector<1x1x96xf32> to vector<16x16x96xf32>
    %61 = arith.mulf %60, %59 : vector<16x16x96xf32>
    %62 = arith.addf %55, %61 : vector<16x16x96xf32>
    %c6 = arith.constant 6 : index
    %c0_44 = arith.constant 0 : index
    %63 = vector.load %arg5[%c6, %c0_44] : memref<9x96xf32, #tpu.memory_space<vmem>>, vector<1x96xf32>
    %64 = vector.shape_cast %63 : vector<1x96xf32> to vector<96xf32>
    %65 = vector.shape_cast %64 : vector<96xf32> to vector<1x1x96xf32>
    %c2_45 = arith.constant 2 : index
    %c0_46 = arith.constant 0 : index
    %c0_47 = arith.constant 0 : index
    %66 = vector.load %arg12[%c2_45, %c0_46, %c0_47] : memref<18x18x96xf32, #tpu.memory_space<vmem>>, vector<16x16x96xf32>
    %67 = vector.broadcast %65 : vector<1x1x96xf32> to vector<16x16x96xf32>
    %68 = arith.mulf %67, %66 : vector<16x16x96xf32>
    %69 = arith.addf %62, %68 : vector<16x16x96xf32>
    %c7 = arith.constant 7 : index
    %c0_48 = arith.constant 0 : index
    %70 = vector.load %arg5[%c7, %c0_48] : memref<9x96xf32, #tpu.memory_space<vmem>>, vector<1x96xf32>
    %71 = vector.shape_cast %70 : vector<1x96xf32> to vector<96xf32>
    %72 = vector.shape_cast %71 : vector<96xf32> to vector<1x1x96xf32>
    %c2_49 = arith.constant 2 : index
    %c1_50 = arith.constant 1 : index
    %c0_51 = arith.constant 0 : index
    %73 = vector.load %arg12[%c2_49, %c1_50, %c0_51] : memref<18x18x96xf32, #tpu.memory_space<vmem>>, vector<16x16x96xf32>
    %74 = vector.broadcast %72 : vector<1x1x96xf32> to vector<16x16x96xf32>
    %75 = arith.mulf %74, %73 : vector<16x16x96xf32>
    %76 = arith.addf %69, %75 : vector<16x16x96xf32>
    %c8 = arith.constant 8 : index
    %c0_52 = arith.constant 0 : index
    %77 = vector.load %arg5[%c8, %c0_52] : memref<9x96xf32, #tpu.memory_space<vmem>>, vector<1x96xf32>
    %78 = vector.shape_cast %77 : vector<1x96xf32> to vector<96xf32>
    %79 = vector.shape_cast %78 : vector<96xf32> to vector<1x1x96xf32>
    %c2_53 = arith.constant 2 : index
    %c2_54 = arith.constant 2 : index
    %c0_55 = arith.constant 0 : index
    %80 = vector.load %arg12[%c2_53, %c2_54, %c0_55] : memref<18x18x96xf32, #tpu.memory_space<vmem>>, vector<16x16x96xf32>
    %81 = vector.broadcast %79 : vector<1x1x96xf32> to vector<16x16x96xf32>
    %82 = arith.mulf %81, %80 : vector<16x16x96xf32>
    %83 = arith.addf %76, %82 : vector<16x16x96xf32>
    %c0_56 = arith.constant 0 : index
    %c0_57 = arith.constant 0 : index
    %84 = vector.load %arg6[%c0_56, %c0_57] : memref<1x96xf32, #tpu.memory_space<vmem>>, vector<1x96xf32>
    %85 = vector.shape_cast %84 : vector<1x96xf32> to vector<1x1x96xf32>
    %86 = vector.broadcast %85 : vector<1x1x96xf32> to vector<16x16x96xf32>
    %87 = arith.mulf %83, %86 : vector<16x16x96xf32>
    %c0_58 = arith.constant 0 : index
    %c0_59 = arith.constant 0 : index
    %88 = vector.load %arg7[%c0_58, %c0_59] : memref<1x96xf32, #tpu.memory_space<vmem>>, vector<1x96xf32>
    %89 = vector.shape_cast %88 : vector<1x96xf32> to vector<1x1x96xf32>
    %90 = vector.broadcast %89 : vector<1x1x96xf32> to vector<16x16x96xf32>
    %91 = arith.addf %87, %90 : vector<16x16x96xf32>
    %cst_60 = arith.constant 0.000000e+00 : f32
    %cst_61 = arith.constant 6.000000e+00 : f32
    %92 = vector.broadcast %cst_60 : f32 to vector<16x16x96xf32>
    %93 = arith.maximumf %92, %91 : vector<16x16x96xf32>
    %94 = vector.broadcast %cst_61 : f32 to vector<16x16x96xf32>
    %95 = arith.minimumf %94, %93 : vector<16x16x96xf32>
    %96 = vector.shape_cast %95 : vector<16x16x96xf32> to vector<256x96xf32>
    %97 = arith.truncf %96 : vector<256x96xf32> to vector<256x96xbf16>
    %c0_62 = arith.constant 0 : index
    %c0_63 = arith.constant 0 : index
    %98 = vector.load %arg8[%c0_62, %c0_63] : memref<96x16xbf16, #tpu.memory_space<vmem>>, vector<96x16xbf16>
    %cst_64 = arith.constant dense<0.000000e+00> : vector<256x16xf32>
    %99 = tpu.matmul %97, %98, %cst_64 {dimension_numbers = #tpu.dot_dimension_numbers<[1], [0], [0], [1], [0, 0, 1, 1], [], []>} : vector<256x96xbf16>, vector<96x16xbf16>, vector<256x16xf32> -> vector<256x16xf32>
    %c0_65 = arith.constant 0 : index
    %c0_66 = arith.constant 0 : index
    %100 = vector.load %arg9[%c0_65, %c0_66] : memref<1x16xf32, #tpu.memory_space<vmem>>, vector<1x16xf32>
    %101 = vector.broadcast %100 : vector<1x16xf32> to vector<256x16xf32>
    %102 = arith.mulf %99, %101 : vector<256x16xf32>
    %c0_67 = arith.constant 0 : index
    %c0_68 = arith.constant 0 : index
    %103 = vector.load %arg10[%c0_67, %c0_68] : memref<1x16xf32, #tpu.memory_space<vmem>>, vector<1x16xf32>
    %104 = vector.broadcast %103 : vector<1x16xf32> to vector<256x16xf32>
    %105 = arith.addf %102, %104 : vector<256x16xf32>
    %106 = arith.addf %105, %2 : vector<256x16xf32>
    %107 = vector.shape_cast %106 : vector<256x16xf32> to vector<16x16x16xf32>
    %c0_69 = arith.constant 0 : index
    %c0_70 = arith.constant 0 : index
    %c0_71 = arith.constant 0 : index
    %c0_72 = arith.constant 0 : index
    %108 = vector.load %arg11[%c0_69, %c0_70, %c0_71, %c0_72] : memref<1x16x16x16xf32, #tpu.memory_space<vmem>>, vector<1x16x16x16xf32>
    %109 = vector.shape_cast %108 : vector<1x16x16x16xf32> to vector<16x16x16xf32>
    %110 = vector.shape_cast %107 : vector<16x16x16xf32> to vector<1x16x16x16xf32>
    tpu.vector_store %arg11[%c0_69, %c0_70, %c0_71, %c0_72], %110 {strides = array<i32>} : memref<1x16x16x16xf32, #tpu.memory_space<vmem>>, vector<1x16x16x16xf32>,
    return
  }
  func.func @transform_0(%arg0: i32) -> (i32, i32, i32, i32) {
    %c0_i32 = arith.constant 0 : i32
    %c0_i32_0 = arith.constant 0 : i32
    %c0_i32_1 = arith.constant 0 : i32
    %c0_i32_2 = arith.constant 0 : i32
    return %arg0, %c0_i32, %c0_i32_0, %c0_i32_1 : i32, i32, i32, i32
  }
  func.func @transform_1(%arg0: i32) -> (i32, i32) {
    %c0_i32 = arith.constant 0 : i32
    %c0_i32_0 = arith.constant 0 : i32
    %c0_i32_1 = arith.constant 0 : i32
    return %c0_i32, %c0_i32_0 : i32, i32
  }
  func.func @transform_2(%arg0: i32) -> (i32, i32) {
    %c0_i32 = arith.constant 0 : i32
    %c0_i32_0 = arith.constant 0 : i32
    %c0_i32_1 = arith.constant 0 : i32
    return %c0_i32, %c0_i32_0 : i32, i32
  }
  func.func @transform_3(%arg0: i32) -> (i32, i32) {
    %c0_i32 = arith.constant 0 : i32
    %c0_i32_0 = arith.constant 0 : i32
    %c0_i32_1 = arith.constant 0 : i32
    return %c0_i32, %c0_i32_0 : i32, i32
  }
  func.func @transform_4(%arg0: i32) -> (i32, i32) {
    %c0_i32 = arith.constant 0 : i32
    %c0_i32_0 = arith.constant 0 : i32
    %c0_i32_1 = arith.constant 0 : i32
    return %c0_i32, %c0_i32_0 : i32, i32
  }
  func.func @transform_5(%arg0: i32) -> (i32, i32) {
    %c0_i32 = arith.constant 0 : i32
    %c0_i32_0 = arith.constant 0 : i32
    %c0_i32_1 = arith.constant 0 : i32
    return %c0_i32, %c0_i32_0 : i32, i32
  }
  func.func @transform_6(%arg0: i32) -> (i32, i32) {
    %c0_i32 = arith.constant 0 : i32
    %c0_i32_0 = arith.constant 0 : i32
    %c0_i32_1 = arith.constant 0 : i32
    return %c0_i32, %c0_i32_0 : i32, i32
  }
  func.func @transform_7(%arg0: i32) -> (i32, i32) {
    %c0_i32 = arith.constant 0 : i32
    %c0_i32_0 = arith.constant 0 : i32
    %c0_i32_1 = arith.constant 0 : i32
    return %c0_i32, %c0_i32_0 : i32, i32
  }
  func.func @transform_8(%arg0: i32) -> (i32, i32) {
    %c0_i32 = arith.constant 0 : i32
    %c0_i32_0 = arith.constant 0 : i32
    %c0_i32_1 = arith.constant 0 : i32
    return %c0_i32, %c0_i32_0 : i32, i32
  }
  func.func @transform_9(%arg0: i32) -> (i32, i32) {
    %c0_i32 = arith.constant 0 : i32
    %c0_i32_0 = arith.constant 0 : i32
    %c0_i32_1 = arith.constant 0 : i32
    return %c0_i32, %c0_i32_0 : i32, i32
  }
  func.func @transform_10(%arg0: i32) -> (i32, i32, i32, i32) {
    %c0_i32 = arith.constant 0 : i32
    %c0_i32_0 = arith.constant 0 : i32
    %c0_i32_1 = arith.constant 0 : i32
    %c0_i32_2 = arith.constant 0 : i32
    return %arg0, %c0_i32, %c0_i32_0, %c0_i32_1 : i32, i32, i32, i32
  }
}

</mosaic_0001>

<llo_original>
// kernel: tpu_custom_call.1
$region0: #{tpu_custom_call.1}
  #allocation0 [shape = 'u32[]', space=smem, size = 0x4, offset = 0x4, fixed_abs, tag = 'smem constant byte address 0x4 - core index']
  #allocation1 [shape = 'u32[144,128]{1,0:T(1,128)}', space=vmem, size = 0x12000, scoped, tag = 'internal scratch']
  #allocation2 [shape = 'f32[18,18,96]{2,1,0:T(8,128)}', space=vmem, size = 0x36000, scoped, tag = 'scratch operand']
  %s0 = inlined_call_operand.hbm [shape: f32[2,16,16,16], index: 0, kind: input, shape index: {}]
  %s1 = inlined_call_operand.vmem [shape: bf16[16,96], index: 1, kind: input, shape index: {}]
  %s2 = inlined_call_operand.vmem [shape: f32[1,96], index: 2, kind: input, shape index: {}]
  %s3 = inlined_call_operand.vmem [shape: f32[1,96], index: 3, kind: input, shape index: {}]
  %s4 = inlined_call_operand.vmem [shape: f32[9,96], index: 4, kind: input, shape index: {}]
  %s5 = inlined_call_operand.vmem [shape: f32[1,96], index: 5, kind: input, shape index: {}]
  %s6 = inlined_call_operand.vmem [shape: f32[1,96], index: 6, kind: input, shape index: {}]
  %s7 = inlined_call_operand.vmem [shape: bf16[96,16], index: 7, kind: input, shape index: {}]
  %s8 = inlined_call_operand.vmem [shape: f32[1,16], index: 8, kind: input, shape index: {}]
  %s9 = inlined_call_operand.vmem [shape: f32[1,16], index: 9, kind: input, shape index: {}]
  %s10 = inlined_call_operand.hbm [shape: f32[2,16,16,16], index: 10, kind: output, shape index: {}]
  %s11 = sld [smem:[#allocation0]]
  $region77: #{tpu_custom_call.1} parent=0
    _
  %s13 = ssub.s32 1, %s11
  %s14 = scalar_select 0, %s13, %s11
  $region1: #{tpu_custom_call.1} parent=0
    #allocation3 [shape = 'u8[262144]{0}', space=vmem, size = 0x40000, scoped, tag = 'input window, operand 0']
    #allocation4 [shape = 's32[2]{0}', space=sflag, size = 0x8, scoped, tag = 'scoped memory for tpu_custom_call.1']
    #allocation5 [shape = 's32[2]{0}', space=sflag, size = 0x8, scoped, tag = 'scoped memory for tpu_custom_call.1']
    #allocation6 [shape = 'u8[262144]{0}', space=vmem, size = 0x40000, scoped, tag = 'output window, operand 0']
    %15 = vsyncpa [#allocation4], 0
    %s16 = scalar_lea.sflag [#allocation4], 1
    %17 = vsyncpa %s16, 0
    %18 = vsyncpa [#allocation5], 0
    %s19 = scalar_lea.sflag [#allocation5], 1
    %20 = vsyncpa %s19, 0
    loop: start=0, step=1, limit=4
    $region2: #{tpu_custom_call.1} parent=1 // loop_pre_header
      _
    $region3: #{tpu_custom_call.1} parent=1 // loop_header
      %s22 = sphi 0, %s26
      %p23 = scmp.ge.s32.totalorder %s22, 4
      %s32 = sphi 0, %s34
      %s35 = sphi 0, %s32
      %s36 = sphi 0, %s35
      %s52 = sphi 0, %s36
      %s56 = sphi 0, %s56
      %s58 = sphi 0, %s56
      %s59 = sphi 0, %s58
      %s73 = sphi 0, %s59
      %s77 = sphi 0, %s77
      %s79 = sphi 0, %s77
      %s80 = sphi 0, %s79
      %s94 = sphi 0, %s80
      %s98 = sphi 0, %s98
      %s100 = sphi 0, %s98
      %s101 = sphi 0, %s100
      %s115 = sphi 0, %s101
      %s119 = sphi 0, %s119
      %s121 = sphi 0, %s119
      %s122 = sphi 0, %s121
      %s136 = sphi 0, %s122
      %s140 = sphi 0, %s140
      %s142 = sphi 0, %s140
      %s143 = sphi 0, %s142
      %s157 = sphi 0, %s143
      %s161 = sphi 0, %s161
      %s163 = sphi 0, %s161
      %s164 = sphi 0, %s163
      %s178 = sphi 0, %s164
      %s182 = sphi 0, %s182
      %s184 = sphi 0, %s182
      %s185 = sphi 0, %s184
      %s199 = sphi 0, %s185
      %s203 = sphi 0, %s203
      %s205 = sphi 0, %s203
      %s206 = sphi 0, %s205
      %s220 = sphi 0, %s206
      %s224 = sphi 0, %s224
      %s226 = sphi 0, %s224
      %s227 = sphi 0, %s226
      %s241 = sphi 0, %s227
      %s247 = sphi 0, %s249
      %s250 = sphi 0, %s247
      %s251 = sphi 0, %s250
      %s267 = sphi 0, %s251
    $region4: #{tpu_custom_call.1} parent=1 // loop_header_branch
      %25 = sbr.rel (%p23) target = $region8
    $region5: #{tpu_custom_call.1} parent=1 // loop_body
      %s27 = ssub.s32 %s22, 1
      %s28 = ssub.s32 %s22, 2
      %s29 = sadd.s32 %s22, 1
      %s30 = ssub.s32 %s22, %s29
      %p31 = scmp.eq.s32.totalorder %s30, 0
      %s33 = sadd.s32 %s32, 1
      %s34 = scalar_select %p31, %s32, %s33
      %p37 = pneg %p31
      %p38 = scmp.eq.s32.totalorder %s22, 1
      %p39 = por %p37, %p38
      %p40 = scmp.ne.s32.totalorder %s32, %s35
      %p41 = scmp.eq.s32.totalorder %s22, 0
      %p42 = por %p40, %p41
      %p43 = scmp.ne.s32.totalorder %s32, %s35
      %p44 = scmp.eq.s32.totalorder %s27, 1
      %p45 = por %p43, %p44
      %p46 = scmp.ne.s32.totalorder %s35, %s36
      %p47 = scmp.eq.s32.totalorder %s27, 0
      %p48 = por %p46, %p47
      %p49 = scmp.ne.s32.totalorder %s35, %s36
      %p50 = scmp.eq.s32.totalorder %s28, 1
      %p51 = por %p49, %p50
      %p53 = scmp.ne.s32.totalorder %s36, %s52
      %p54 = scmp.eq.s32.totalorder %s28, 0
      %p55 = por %p53, %p54
      %s57 = sadd.s32 %s56, 1
      %p60 = scmp.eq.s32.totalorder %s22, 1
      %p61 = scmp.ne.s32.totalorder %s56, %s58
      %p62 = scmp.eq.s32.totalorder %s22, 0
      %p63 = por %p61, %p62
      %p64 = scmp.ne.s32.totalorder %s56, %s58
      %p65 = scmp.eq.s32.totalorder %s27, 1
      %p66 = por %p64, %p65
      %p67 = scmp.ne.s32.totalorder %s58, %s59
      %p68 = scmp.eq.s32.totalorder %s27, 0
      %p69 = por %p67, %p68
      %p70 = scmp.ne.s32.totalorder %s58, %s59
      %p71 = scmp.eq.s32.totalorder %s28, 1
      %p72 = por %p70, %p71
      %p74 = scmp.ne.s32.totalorder %s59, %s73
      %p75 = scmp.eq.s32.totalorder %s28, 0
      %p76 = por %p74, %p75
      %s78 = sadd.s32 %s77, 1
      %p81 = scmp.eq.s32.totalorder %s22, 1
      %p82 = scmp.ne.s32.totalorder %s77, %s79
      %p83 = scmp.eq.s32.totalorder %s22, 0
      %p84 = por %p82, %p83
      %p85 = scmp.ne.s32.totalorder %s77, %s79
      %p86 = scmp.eq.s32.totalorder %s27, 1
      %p87 = por %p85, %p86
      %p88 = scmp.ne.s32.totalorder %s79, %s80
      %p89 = scmp.eq.s32.totalorder %s27, 0
      %p90 = por %p88, %p89
      %p91 = scmp.ne.s32.totalorder %s79, %s80
      %p92 = scmp.eq.s32.totalorder %s28, 1
      %p93 = por %p91, %p92
      %p95 = scmp.ne.s32.totalorder %s80, %s94
      %p96 = scmp.eq.s32.totalorder %s28, 0
      %p97 = por %p95, %p96
      %s99 = sadd.s32 %s98, 1
      %p102 = scmp.eq.s32.totalorder %s22, 1
      %p103 = scmp.ne.s32.totalorder %s98, %s100
      %p104 = scmp.eq.s32.totalorder %s22, 0
      %p105 = por %p103, %p104
      %p106 = scmp.ne.s32.totalorder %s98, %s100
      %p107 = scmp.eq.s32.totalorder %s27, 1
      %p108 = por %p106, %p107
      %p109 = scmp.ne.s32.totalorder %s100, %s101
      %p110 = scmp.eq.s32.totalorder %s27, 0
      %p111 = por %p109, %p110
      %p112 = scmp.ne.s32.totalorder %s100, %s101
      %p113 = scmp.eq.s32.totalorder %s28, 1
      %p114 = por %p112, %p113
      %p116 = scmp.ne.s32.totalorder %s101, %s115
      %p117 = scmp.eq.s32.totalorder %s28, 0
      %p118 = por %p116, %p117
      %s120 = sadd.s32 %s119, 1
      %p123 = scmp.eq.s32.totalorder %s22, 1
      %p124 = scmp.ne.s32.totalorder %s119, %s121
      %p125 = scmp.eq.s32.totalorder %s22, 0
      %p126 = por %p124, %p125
      %p127 = scmp.ne.s32.totalorder %s119, %s121
      %p128 = scmp.eq.s32.totalorder %s27, 1
      %p129 = por %p127, %p128
      %p130 = scmp.ne.s32.totalorder %s121, %s122
      %p131 = scmp.eq.s32.totalorder %s27, 0
      %p132 = por %p130, %p131
      %p133 = scmp.ne.s32.totalorder %s121, %s122
      %p134 = scmp.eq.s32.totalorder %s28, 1
      %p135 = por %p133, %p134
      %p137 = scmp.ne.s32.totalorder %s122, %s136
      %p138 = scmp.eq.s32.totalorder %s28, 0
      %p139 = por %p137, %p138
      %s141 = sadd.s32 %s140, 1
      %p144 = scmp.eq.s32.totalorder %s22, 1
      %p145 = scmp.ne.s32.totalorder %s140, %s142
      %p146 = scmp.eq.s32.totalorder %s22, 0
      %p147 = por %p145, %p146
      %p148 = scmp.ne.s32.totalorder %s140, %s142
      %p149 = scmp.eq.s32.totalorder %s27, 1
      %p150 = por %p148, %p149
      %p151 = scmp.ne.s32.totalorder %s142, %s143
      %p152 = scmp.eq.s32.totalorder %s27, 0
      %p153 = por %p151, %p152
      %p154 = scmp.ne.s32.totalorder %s142, %s143
      %p155 = scmp.eq.s32.totalorder %s28, 1
      %p156 = por %p154, %p155
      %p158 = scmp.ne.s32.totalorder %s143, %s157
      %p159 = scmp.eq.s32.totalorder %s28, 0
      %p160 = por %p158, %p159
      %s162 = sadd.s32 %s161, 1
      %p165 = scmp.eq.s32.totalorder %s22, 1
      %p166 = scmp.ne.s32.totalorder %s161, %s163
      %p167 = scmp.eq.s32.totalorder %s22, 0
      %p168 = por %p166, %p167
      %p169 = scmp.ne.s32.totalorder %s161, %s163
      %p170 = scmp.eq.s32.totalorder %s27, 1
      %p171 = por %p169, %p170
      %p172 = scmp.ne.s32.totalorder %s163, %s164
      %p173 = scmp.eq.s32.totalorder %s27, 0
      %p174 = por %p172, %p173
      %p175 = scmp.ne.s32.totalorder %s163, %s164
      %p176 = scmp.eq.s32.totalorder %s28, 1
      %p177 = por %p175, %p176
      %p179 = scmp.ne.s32.totalorder %s164, %s178
      %p180 = scmp.eq.s32.totalorder %s28, 0
      %p181 = por %p179, %p180
      %s183 = sadd.s32 %s182, 1
      %p186 = scmp.eq.s32.totalorder %s22, 1
      %p187 = scmp.ne.s32.totalorder %s182, %s184
      %p188 = scmp.eq.s32.totalorder %s22, 0
      %p189 = por %p187, %p188
      %p190 = scmp.ne.s32.totalorder %s182, %s184
      %p191 = scmp.eq.s32.totalorder %s27, 1
      %p192 = por %p190, %p191
      %p193 = scmp.ne.s32.totalorder %s184, %s185
      %p194 = scmp.eq.s32.totalorder %s27, 0
      %p195 = por %p193, %p194
      %p196 = scmp.ne.s32.totalorder %s184, %s185
      %p197 = scmp.eq.s32.totalorder %s28, 1
      %p198 = por %p196, %p197
      %p200 = scmp.ne.s32.totalorder %s185, %s199
      %p201 = scmp.eq.s32.totalorder %s28, 0
      %p202 = por %p200, %p201
      %s204 = sadd.s32 %s203, 1
      %p207 = scmp.eq.s32.totalorder %s22, 1
      %p208 = scmp.ne.s32.totalorder %s203, %s205
      %p209 = scmp.eq.s32.totalorder %s22, 0
      %p210 = por %p208, %p209
      %p211 = scmp.ne.s32.totalorder %s203, %s205
      %p212 = scmp.eq.s32.totalorder %s27, 1
      %p213 = por %p211, %p212
      %p214 = scmp.ne.s32.totalorder %s205, %s206
      %p215 = scmp.eq.s32.totalorder %s27, 0
      %p216 = por %p214, %p215
      %p217 = scmp.ne.s32.totalorder %s205, %s206
      %p218 = scmp.eq.s32.totalorder %s28, 1
      %p219 = por %p217, %p218
      %p221 = scmp.ne.s32.totalorder %s206, %s220
      %p222 = scmp.eq.s32.totalorder %s28, 0
      %p223 = por %p221, %p222
      %s225 = sadd.s32 %s224, 1
      %p228 = scmp.eq.s32.totalorder %s22, 1
      %p229 = scmp.ne.s32.totalorder %s224, %s226
      %p230 = scmp.eq.s32.totalorder %s22, 0
      %p231 = por %p229, %p230
      %p232 = scmp.ne.s32.totalorder %s224, %s226
      %p233 = scmp.eq.s32.totalorder %s27, 1
      %p234 = por %p232, %p233
      %p235 = scmp.ne.s32.totalorder %s226, %s227
      %p236 = scmp.eq.s32.totalorder %s27, 0
      %p237 = por %p235, %p236
      %p238 = scmp.ne.s32.totalorder %s226, %s227
      %p239 = scmp.eq.s32.totalorder %s28, 1
      %p240 = por %p238, %p239
      %p242 = scmp.ne.s32.totalorder %s227, %s241
      %p243 = scmp.eq.s32.totalorder %s28, 0
      %p244 = por %p242, %p243
      %s245 = ssub.s32 %s22, %s29
      %p246 = scmp.eq.s32.totalorder %s245, 0
      %s248 = sadd.s32 %s247, 1
      %s249 = scalar_select %p246, %s247, %s248
      %p252 = pneg %p246
      %p253 = scmp.eq.s32.totalorder %s22, 1
      %p254 = por %p252, %p253
      %p255 = scmp.ne.s32.totalorder %s247, %s250
      %p256 = scmp.eq.s32.totalorder %s22, 0
      %p257 = por %p255, %p256
      %p258 = scmp.ne.s32.totalorder %s247, %s250
      %p259 = scmp.eq.s32.totalorder %s27, 1
      %p260 = por %p258, %p259
      %p261 = scmp.ne.s32.totalorder %s250, %s251
      %p262 = scmp.eq.s32.totalorder %s27, 0
      %p263 = por %p261, %p262
      %p264 = scmp.ne.s32.totalorder %s250, %s251
      %p265 = scmp.eq.s32.totalorder %s28, 1
      %p266 = por %p264, %p265
      %p268 = scmp.ne.s32.totalorder %s251, %s267
      %p269 = scmp.eq.s32.totalorder %s28, 0
      %p270 = por %p268, %p269
      %p271 = scmp.le.s32.totalorder 1, %s22
      %p272 = scmp.lt.s32.totalorder %s22, 3
      %p273 = pnand %p271, %p272
      %p274 = pneg %p273
      // Predicated region
      $region9: #{tpu_custom_call.1} parent=5 // pred_check
        _
      $region10: #{tpu_custom_call.1} parent=5 // pred_check_branch
        %276 = sbr.rel (%p273) target = $region12
      $region11: #{tpu_custom_call.1} parent=5 // pred_region
        %s277 = ssub.s32 %s22, 1
        // Predicated region
        $region13: #{tpu_custom_call.1} parent=11 // pred_check
          %p278 = pneg %p69
        $region14: #{tpu_custom_call.1} parent=11 // pred_check_branch
          %280 = sbr.rel (%p278) target = $region16
        $region15: #{tpu_custom_call.1} parent=11 // pred_region
          _
        $region16: #{tpu_custom_call.1} parent=11 // pred_fallthru
          _
        // Predicated region
        $region17: #{tpu_custom_call.1} parent=11 // pred_check
          %p281 = pneg %p90
        $region18: #{tpu_custom_call.1} parent=11 // pred_check_branch
          %283 = sbr.rel (%p281) target = $region20
        $region19: #{tpu_custom_call.1} parent=11 // pred_region
          _
        $region20: #{tpu_custom_call.1} parent=11 // pred_fallthru
          _
        // Predicated region
        $region21: #{tpu_custom_call.1} parent=11 // pred_check
          %p284 = pneg %p111
        $region22: #{tpu_custom_call.1} parent=11 // pred_check_branch
          %286 = sbr.rel (%p284) target = $region24
        $region23: #{tpu_custom_call.1} parent=11 // pred_region
          _
        $region24: #{tpu_custom_call.1} parent=11 // pred_fallthru
          _
        // Predicated region
        $region25: #{tpu_custom_call.1} parent=11 // pred_check
          %p287 = pneg %p132
        $region26: #{tpu_custom_call.1} parent=11 // pred_check_branch
          %289 = sbr.rel (%p287) target = $region28
        $region27: #{tpu_custom_call.1} parent=11 // pred_region
          _
        $region28: #{tpu_custom_call.1} parent=11 // pred_fallthru
          _
        // Predicated region
        $region29: #{tpu_custom_call.1} parent=11 // pred_check
          %p290 = pneg %p153
        $region30: #{tpu_custom_call.1} parent=11 // pred_check_branch
          %292 = sbr.rel (%p290) target = $region32
        $region31: #{tpu_custom_call.1} parent=11 // pred_region
          _
        $region32: #{tpu_custom_call.1} parent=11 // pred_fallthru
          _
        // Predicated region
        $region33: #{tpu_custom_call.1} parent=11 // pred_check
          %p293 = pneg %p174
        $region34: #{tpu_custom_call.1} parent=11 // pred_check_branch
          %295 = sbr.rel (%p293) target = $region36
        $region35: #{tpu_custom_call.1} parent=11 // pred_region
          _
        $region36: #{tpu_custom_call.1} parent=11 // pred_fallthru
          _
        // Predicated region
        $region37: #{tpu_custom_call.1} parent=11 // pred_check
          %p296 = pneg %p195
        $region38: #{tpu_custom_call.1} parent=11 // pred_check_branch
          %298 = sbr.rel (%p296) target = $region40
        $region39: #{tpu_custom_call.1} parent=11 // pred_region
          _
        $region40: #{tpu_custom_call.1} parent=11 // pred_fallthru
          _
        // Predicated region
        $region41: #{tpu_custom_call.1} parent=11 // pred_check
          %p299 = pneg %p216
        $region42: #{tpu_custom_call.1} parent=11 // pred_check_branch
          %301 = sbr.rel (%p299) target = $region44
        $region43: #{tpu_custom_call.1} parent=11 // pred_region
          _
        $region44: #{tpu_custom_call.1} parent=11 // pred_fallthru
          _
        // Predicated region
        $region45: #{tpu_custom_call.1} parent=11 // pred_check
          %p302 = pneg %p237
        $region46: #{tpu_custom_call.1} parent=11 // pred_check_branch
          %304 = sbr.rel (%p302) target = $region48
        $region47: #{tpu_custom_call.1} parent=11 // pred_region
          _
        $region48: #{tpu_custom_call.1} parent=11 // pred_fallthru
          _
      $region12: #{tpu_custom_call.1} parent=5 // pred_fallthru
        _
      %p305 = scmp.lt.s32.totalorder %s22, 2
      // Predicated region
      $region49: #{tpu_custom_call.1} parent=5 // pred_check
        %p306 = pneg %p305
      $region50: #{tpu_custom_call.1} parent=5 // pred_check_branch
        %308 = sbr.rel (%p306) target = $region52
      $region51: #{tpu_custom_call.1} parent=5 // pred_region
        // Predicated region
        $region53: #{tpu_custom_call.1} parent=51 // pred_check
          %p309 = pneg %p42
        $region54: #{tpu_custom_call.1} parent=51 // pred_check_branch
          %311 = sbr.rel (%p309) target = $region56
        $region55: #{tpu_custom_call.1} parent=51 // pred_region
          %s312 = sand.u32 %s32, 1
          %s313 = scalar_lea.sflag [#allocation4], %s312
          %s314 = sand.u32 %s32, 1
          %s315 = smul.addr %s314, 256
          %s316 = scalar_lea.vmem [#allocation3], %s315
          %s318 = ssub.s32 4096, 4096
          %319 = vsyncadd %s313, %s318
          %s320 = smul.addr %s22, 32
          %s321 = smul.addr %s320, 128
          %s322 = scalar_lea.hbm %s0, %s321
          %s323 = sshll.u32 %s316, 4
          %s324 = int_to_ptr.vmem [resolvable:$true] %s323
          %329 = dma.hbm_to_vmem [thread:$0]  %s322, 4096, %s324, %s313, 128, 128, 8
        $region56: #{tpu_custom_call.1} parent=51 // pred_fallthru
          _
      $region52: #{tpu_custom_call.1} parent=5 // pred_fallthru
        _
      %p330 = scmp.le.s32.totalorder 1, %s22
      %p331 = scmp.lt.s32.totalorder %s22, 3
      %p332 = pnand %p330, %p331
      %p333 = pneg %p332
      // Predicated region
      $region57: #{tpu_custom_call.1} parent=5 // pred_check
        _
      $region58: #{tpu_custom_call.1} parent=5 // pred_check_branch
        %335 = sbr.rel (%p332) target = $region60
      $region59: #{tpu_custom_call.1} parent=5 // pred_region
        %s336 = ssub.s32 %s22, 1
        %s337 = sand.u32 %s35, 1
        %s338 = scalar_lea.sflag [#allocation4], %s337
        %s339 = sand.u32 %s35, 1
        %s340 = smul.addr %s339, 256
        %s341 = scalar_lea.vmem [#allocation3], %s340
        // Predicated region
        $region61: #{tpu_custom_call.1} parent=59 // pred_check
          %p342 = pneg %p48
        $region62: #{tpu_custom_call.1} parent=59 // pred_check_branch
          %344 = sbr.rel (%p342) target = $region64
        $region63: #{tpu_custom_call.1} parent=59 // pred_region
          %345 = dma.done %s338, 4096
        $region64: #{tpu_custom_call.1} parent=59 // pred_fallthru
          _
        %s346 = sand.u32 %s35, 1
        %s347 = scalar_lea.sflag [#allocation4], %s346
        %s348 = sand.u32 %s35, 1
        %s349 = smul.addr %s348, 256
        %s350 = scalar_lea.vmem [#allocation3], %s349
        %p351 = pneg %p48
        %p352 = pneg %p45
        %p353 = pneg %p69
        %p354 = pneg %p66
        %p355 = pneg %p90
        %p356 = pneg %p87
        %p357 = pneg %p111
        %p358 = pneg %p108
        %p359 = pneg %p132
        %p360 = pneg %p129
        %p361 = pneg %p153
        %p362 = pneg %p150
        %p363 = pneg %p174
        %p364 = pneg %p171
        %p365 = pneg %p195
        %p366 = pneg %p192
        %p367 = pneg %p216
        %p368 = pneg %p213
        %p369 = pneg %p237
        %p370 = pneg %p234
        %p371 = pneg %p263
        %p372 = pneg %p260
        %s373 = sand.u32 %s250, 1
        %s374 = scalar_lea.sflag [#allocation5], %s373
        %s375 = sand.u32 %s250, 1
        %s376 = smul.addr %s375, 256
        %s377 = scalar_lea.vmem [#allocation6], %s376
        %v379 = vld [vmem:[%s341] sm:$0xff]
        %v380 = vld [vmem:[%s341 + $0x8] sm:$0xff]
        %v381 = vld [vmem:[%s341 + $0x10] sm:$0xff]
        %v382 = vld [vmem:[%s341 + $0x18] sm:$0xff]
        %v383 = vld [vmem:[%s341 + $0x20] sm:$0xff]
        %v384 = vld [vmem:[%s341 + $0x28] sm:$0xff]
        %v385 = vld [vmem:[%s341 + $0x30] sm:$0xff]
        %v386 = vld [vmem:[%s341 + $0x38] sm:$0xff]
        %v387 = vld [vmem:[%s341 + $0x40] sm:$0xff]
        %v388 = vld [vmem:[%s341 + $0x48] sm:$0xff]
        %v389 = vld [vmem:[%s341 + $0x50] sm:$0xff]
        %v390 = vld [vmem:[%s341 + $0x58] sm:$0xff]
        %v391 = vld [vmem:[%s341 + $0x60] sm:$0xff]
        %v392 = vld [vmem:[%s341 + $0x68] sm:$0xff]
        %v393 = vld [vmem:[%s341 + $0x70] sm:$0xff]
        %v394 = vld [vmem:[%s341 + $0x78] sm:$0xff]
        %v395 = vld [vmem:[%s341 + $0x80] sm:$0xff]
        %v396 = vld [vmem:[%s341 + $0x88] sm:$0xff]
        %v397 = vld [vmem:[%s341 + $0x90] sm:$0xff]
        %v398 = vld [vmem:[%s341 + $0x98] sm:$0xff]
        %v399 = vld [vmem:[%s341 + $0xa0] sm:$0xff]
        %v400 = vld [vmem:[%s341 + $0xa8] sm:$0xff]
        %v401 = vld [vmem:[%s341 + $0xb0] sm:$0xff]
        %v402 = vld [vmem:[%s341 + $0xb8] sm:$0xff]
        %v403 = vld [vmem:[%s341 + $0xc0] sm:$0xff]
        %v404 = vld [vmem:[%s341 + $0xc8] sm:$0xff]
        %v405 = vld [vmem:[%s341 + $0xd0] sm:$0xff]
        %v406 = vld [vmem:[%s341 + $0xd8] sm:$0xff]
        %v407 = vld [vmem:[%s341 + $0xe0] sm:$0xff]
        %v408 = vld [vmem:[%s341 + $0xe8] sm:$0xff]
        %v409 = vld [vmem:[%s341 + $0xf0] sm:$0xff]
        %v410 = vld [vmem:[%s341 + $0xf8] sm:$0xff]
        %v411 = vpack.c.bf16 %v380, %v379
        %v412 = vpack.c.bf16 %v382, %v381
        %v413 = vpack.c.bf16 %v384, %v383
        %v414 = vpack.c.bf16 %v386, %v385
        %v415 = vpack.c.bf16 %v388, %v387
        %v416 = vpack.c.bf16 %v390, %v389
        %v417 = vpack.c.bf16 %v392, %v391
        %v418 = vpack.c.bf16 %v394, %v393
        %v419 = vpack.c.bf16 %v396, %v395
        %v420 = vpack.c.bf16 %v398, %v397
        %v421 = vpack.c.bf16 %v400, %v399
        %v422 = vpack.c.bf16 %v402, %v401
        %v423 = vpack.c.bf16 %v404, %v403
        %v424 = vpack.c.bf16 %v406, %v405
        %v425 = vpack.c.bf16 %v408, %v407
        %v426 = vpack.c.bf16 %v410, %v409
        %v427 = vld [vmem:[%s1] sm:$0xf]
        %v428 = vld [vmem:[%s1 + $0x4] sm:$0xf]
        %v431 = vunpack.c.l.b16 %v427
        %v432 = vunpack.c.l.b16 %v428
        %v433 = vpack.c.b16 %v432, %v431
        %vm435 = vcmask 130048
        %v437 = vsel %vm435, %v411, 0
        %v440 = vsel %vm435, %v412, 0
        %v443 = vsel %vm435, %v413, 0
        %v446 = vsel %vm435, %v414, 0
        %v449 = vsel %vm435, %v415, 0
        %v452 = vsel %vm435, %v416, 0
        %v455 = vsel %vm435, %v417, 0
        %v458 = vsel %vm435, %v418, 0
        %v461 = vsel %vm435, %v419, 0
        %v464 = vsel %vm435, %v420, 0
        %v467 = vsel %vm435, %v421, 0
        %v470 = vsel %vm435, %v422, 0
        %v473 = vsel %vm435, %v423, 0
        %v476 = vsel %vm435, %v424, 0
        %v479 = vsel %vm435, %v425, 0
        %v482 = vsel %vm435, %v426, 0
        %484 = vmatprep.subr.bf16.mxu0 0
        %485 = vmatpush1.bf16.msra.mxu0 0
        %486 = vmatprep.subr.bf16.mxu0 0
        %487 = vmatpush1.bf16.msra.mxu0 0
        %488 = vmatprep.subr.bf16.mxu0 0
        %489 = vmatpush1.bf16.msra.mxu0 0
        %490 = vmatprep.subr.bf16.mxu0 0
        %491 = vmatpush1.bf16.msra.mxu0 0
        %492 = vmatprep.subr.bf16.mxu0 0
        %493 = vmatpush1.bf16.msra.mxu0 0
        %494 = vmatprep.subr.bf16.mxu0 0
        %495 = vmatpush1.bf16.msra.mxu0 0
        %496 = vmatprep.subr.bf16.mxu0 0
        %497 = vmatpush1.bf16.msra.mxu0 0
        %498 = vmatprep.subr.bf16.mxu0 0
        %499 = vmatpush1.bf16.msra.mxu0 %v433
        %500 = vmatprep.subr.bf16.mxu0 0
        %501 = vmatpush2.bf16.msra.mxu0 0
        %502 = vmatprep.subr.bf16.mxu0 0
        %503 = vmatpush2.bf16.msra.mxu0 0
        %504 = vmatprep.subr.bf16.mxu0 0
        %505 = vmatpush2.bf16.msra.mxu0 0
        %506 = vmatprep.subr.bf16.mxu0 0
        %507 = vmatpush2.bf16.msra.mxu0 0
        %508 = vmatprep.subr.bf16.mxu0 0
        %509 = vmatpush2.bf16.msra.mxu0 0
        %510 = vmatprep.subr.bf16.mxu0 0
        %511 = vmatpush2.bf16.msra.mxu0 0
        %512 = vmatprep.subr.bf16.mxu0 0
        %513 = vmatpush2.bf16.msra.mxu0 0
        %514 = vmatprep.subr.bf16.mxu0 0
        %515 = vmatpush2.bf16.msra.mxu0 0
        %516 = vmatprep.mubr.bf16.mxu0 0
        %517 = vmatmul.mubr.bf16.gmra.mxu0 %v437
        %v518 = vpop.f32.mrf.mxu0
        %v519 = vadd.f32 0.0, %v518
        %v520 = vpop.f32.mrf.mxu0
        %v521 = vpop.f32.mrf.mxu0
        %v522 = vadd.f32 0.0, %v521
        %v523 = vpop.f32.mrf.mxu0
        %524 = vmatprep.mubr.bf16.mxu0 0
        %525 = vmatmul.mubr.bf16.gmra.mxu0 %v440
        %v526 = vpop.f32.mrf.mxu0
        %v527 = vadd.f32 0.0, %v526
        %v528 = vpop.f32.mrf.mxu0
        %v529 = vpop.f32.mrf.mxu0
        %v530 = vadd.f32 0.0, %v529
        %v531 = vpop.f32.mrf.mxu0
        %532 = vmatprep.mubr.bf16.mxu0 0
        %533 = vmatmul.mubr.bf16.gmra.mxu0 %v443
        %v534 = vpop.f32.mrf.mxu0
        %v535 = vadd.f32 0.0, %v534
        %v536 = vpop.f32.mrf.mxu0
        %v537 = vpop.f32.mrf.mxu0
        %v538 = vadd.f32 0.0, %v537
        %v539 = vpop.f32.mrf.mxu0
        %540 = vmatprep.mubr.bf16.mxu0 0
        %541 = vmatmul.mubr.bf16.gmra.mxu0 %v446
        %v542 = vpop.f32.mrf.mxu0
        %v543 = vadd.f32 0.0, %v542
        %v544 = vpop.f32.mrf.mxu0
        %v545 = vpop.f32.mrf.mxu0
        %v546 = vadd.f32 0.0, %v545
        %v547 = vpop.f32.mrf.mxu0
        %548 = vmatprep.mubr.bf16.mxu0 0
        %549 = vmatmul.mubr.bf16.gmra.mxu0 %v449
        %v550 = vpop.f32.mrf.mxu0
        %v551 = vadd.f32 0.0, %v550
        %v552 = vpop.f32.mrf.mxu0
        %v553 = vpop.f32.mrf.mxu0
        %v554 = vadd.f32 0.0, %v553
        %v555 = vpop.f32.mrf.mxu0
        %556 = vmatprep.mubr.bf16.mxu0 0
        %557 = vmatmul.mubr.bf16.gmra.mxu0 %v452
        %v558 = vpop.f32.mrf.mxu0
        %v559 = vadd.f32 0.0, %v558
        %v560 = vpop.f32.mrf.mxu0
        %v561 = vpop.f32.mrf.mxu0
        %v562 = vadd.f32 0.0, %v561
        %v563 = vpop.f32.mrf.mxu0
        %564 = vmatprep.mubr.bf16.mxu0 0
        %565 = vmatmul.mubr.bf16.gmra.mxu0 %v455
        %v566 = vpop.f32.mrf.mxu0
        %v567 = vadd.f32 0.0, %v566
        %v568 = vpop.f32.mrf.mxu0
        %v569 = vpop.f32.mrf.mxu0
        %v570 = vadd.f32 0.0, %v569
        %v571 = vpop.f32.mrf.mxu0
        %572 = vmatprep.mubr.bf16.mxu0 0
        %573 = vmatmul.mubr.bf16.gmra.mxu0 %v458
        %v574 = vpop.f32.mrf.mxu0
        %v575 = vadd.f32 0.0, %v574
        %v576 = vpop.f32.mrf.mxu0
        %v577 = vpop.f32.mrf.mxu0
        %v578 = vadd.f32 0.0, %v577
        %v579 = vpop.f32.mrf.mxu0
        %580 = vmatprep.mubr.bf16.mxu0 0
        %581 = vmatmul.mubr.bf16.gmra.mxu0 %v461
        %v582 = vpop.f32.mrf.mxu0
        %v583 = vadd.f32 0.0, %v582
        %v584 = vpop.f32.mrf.mxu0
        %v585 = vpop.f32.mrf.mxu0
        %v586 = vadd.f32 0.0, %v585
        %v587 = vpop.f32.mrf.mxu0
        %588 = vmatprep.mubr.bf16.mxu0 0
        %589 = vmatmul.mubr.bf16.gmra.mxu0 %v464
        %v590 = vpop.f32.mrf.mxu0
        %v591 = vadd.f32 0.0, %v590
        %v592 = vpop.f32.mrf.mxu0
        %v593 = vpop.f32.mrf.mxu0
        %v594 = vadd.f32 0.0, %v593
        %v595 = vpop.f32.mrf.mxu0
        %596 = vmatprep.mubr.bf16.mxu0 0
        %597 = vmatmul.mubr.bf16.gmra.mxu0 %v467
        %v598 = vpop.f32.mrf.mxu0
        %v599 = vadd.f32 0.0, %v598
        %v600 = vpop.f32.mrf.mxu0
        %v601 = vpop.f32.mrf.mxu0
        %v602 = vadd.f32 0.0, %v601
        %v603 = vpop.f32.mrf.mxu0
        %604 = vmatprep.mubr.bf16.mxu0 0
        %605 = vmatmul.mubr.bf16.gmra.mxu0 %v470
        %v606 = vpop.f32.mrf.mxu0
        %v607 = vadd.f32 0.0, %v606
        %v608 = vpop.f32.mrf.mxu0
        %v609 = vpop.f32.mrf.mxu0
        %v610 = vadd.f32 0.0, %v609
        %v611 = vpop.f32.mrf.mxu0
        %612 = vmatprep.mubr.bf16.mxu0 0
        %613 = vmatmul.mubr.bf16.gmra.mxu0 %v473
        %v614 = vpop.f32.mrf.mxu0
        %v615 = vadd.f32 0.0, %v614
        %v616 = vpop.f32.mrf.mxu0
        %v617 = vpop.f32.mrf.mxu0
        %v618 = vadd.f32 0.0, %v617
        %v619 = vpop.f32.mrf.mxu0
        %620 = vmatprep.mubr.bf16.mxu0 0
        %621 = vmatmul.mubr.bf16.gmra.mxu0 %v476
        %v622 = vpop.f32.mrf.mxu0
        %v623 = vadd.f32 0.0, %v622
        %v624 = vpop.f32.mrf.mxu0
        %v625 = vpop.f32.mrf.mxu0
        %v626 = vadd.f32 0.0, %v625
        %v627 = vpop.f32.mrf.mxu0
        %628 = vmatprep.mubr.bf16.mxu0 0
        %629 = vmatmul.mubr.bf16.gmra.mxu0 %v479
        %v630 = vpop.f32.mrf.mxu0
        %v631 = vadd.f32 0.0, %v630
        %v632 = vpop.f32.mrf.mxu0
        %v633 = vpop.f32.mrf.mxu0
        %v634 = vadd.f32 0.0, %v633
        %v635 = vpop.f32.mrf.mxu0
        %636 = vmatprep.mubr.bf16.mxu0 0
        %637 = vmatmul.mubr.bf16.gmra.mxu0 %v482
        %v638 = vpop.f32.mrf.mxu0
        %v639 = vadd.f32 0.0, %v638
        %v640 = vpop.f32.mrf.mxu0
        %v641 = vpop.f32.mrf.mxu0
        %v642 = vadd.f32 0.0, %v641
        %v643 = vpop.f32.mrf.mxu0
        %644 = vdwg.mxu0
        %v645 = vld [vmem:[%s2] sm:$0x1]
        %v647 = vlaneseq
        %v648 = vshrl.u32 %v647, 7
        %v649 = vsub.s32 0, %v648
        %v650 = vrot.slane %v645, %v649
        %v652 = vmul.f32 %v519, %v650
        %v653 = vmul.f32 %v522, %v650
        %v654 = vmul.f32 %v527, %v650
        %v655 = vmul.f32 %v530, %v650
        %v656 = vmul.f32 %v535, %v650
        %v657 = vmul.f32 %v538, %v650
        %v658 = vmul.f32 %v543, %v650
        %v659 = vmul.f32 %v546, %v650
        %v660 = vmul.f32 %v551, %v650
        %v661 = vmul.f32 %v554, %v650
        %v662 = vmul.f32 %v559, %v650
        %v663 = vmul.f32 %v562, %v650
        %v664 = vmul.f32 %v567, %v650
        %v665 = vmul.f32 %v570, %v650
        %v666 = vmul.f32 %v575, %v650
        %v667 = vmul.f32 %v578, %v650
        %v668 = vmul.f32 %v583, %v650
        %v669 = vmul.f32 %v586, %v650
        %v670 = vmul.f32 %v591, %v650
        %v671 = vmul.f32 %v594, %v650
        %v672 = vmul.f32 %v599, %v650
        %v673 = vmul.f32 %v602, %v650
        %v674 = vmul.f32 %v607, %v650
        %v675 = vmul.f32 %v610, %v650
        %v676 = vmul.f32 %v615, %v650
        %v677 = vmul.f32 %v618, %v650
        %v678 = vmul.f32 %v623, %v650
        %v679 = vmul.f32 %v626, %v650
        %v680 = vmul.f32 %v631, %v650
        %v681 = vmul.f32 %v634, %v650
        %v682 = vmul.f32 %v639, %v650
        %v683 = vmul.f32 %v642, %v650
        %v684 = vld [vmem:[%s3] sm:$0x1]
        %v686 = vlaneseq
        %v687 = vshrl.u32 %v686, 7
        %v688 = vsub.s32 0, %v687
        %v689 = vrot.slane %v684, %v688
        %v691 = vadd.f32 %v652, %v689
        %v692 = vadd.f32 %v653, %v689
        %v693 = vadd.f32 %v654, %v689
        %v694 = vadd.f32 %v655, %v689
        %v695 = vadd.f32 %v656, %v689
        %v696 = vadd.f32 %v657, %v689
        %v697 = vadd.f32 %v658, %v689
        %v698 = vadd.f32 %v659, %v689
        %v699 = vadd.f32 %v660, %v689
        %v700 = vadd.f32 %v661, %v689
        %v701 = vadd.f32 %v662, %v689
        %v702 = vadd.f32 %v663, %v689
        %v703 = vadd.f32 %v664, %v689
        %v704 = vadd.f32 %v665, %v689
        %v705 = vadd.f32 %v666, %v689
        %v706 = vadd.f32 %v667, %v689
        %v707 = vadd.f32 %v668, %v689
        %v708 = vadd.f32 %v669, %v689
        %v709 = vadd.f32 %v670, %v689
        %v710 = vadd.f32 %v671, %v689
        %v711 = vadd.f32 %v672, %v689
        %v712 = vadd.f32 %v673, %v689
        %v713 = vadd.f32 %v674, %v689
        %v714 = vadd.f32 %v675, %v689
        %v715 = vadd.f32 %v676, %v689
        %v716 = vadd.f32 %v677, %v689
        %v717 = vadd.f32 %v678, %v689
        %v718 = vadd.f32 %v679, %v689
        %v719 = vadd.f32 %v680, %v689
        %v720 = vadd.f32 %v681, %v689
        %v721 = vadd.f32 %v682, %v689
        %v722 = vadd.f32 %v683, %v689
        %v723 = vmax.f32 %v691, 0.0
        %v724 = vmax.f32 %v692, 0.0
        %v725 = vmax.f32 %v693, 0.0
        %v726 = vmax.f32 %v694, 0.0
        %v727 = vmax.f32 %v695, 0.0
        %v728 = vmax.f32 %v696, 0.0
        %v729 = vmax.f32 %v697, 0.0
        %v730 = vmax.f32 %v698, 0.0
        %v731 = vmax.f32 %v699, 0.0
        %v732 = vmax.f32 %v700, 0.0
        %v733 = vmax.f32 %v701, 0.0
        %v734 = vmax.f32 %v702, 0.0
        %v735 = vmax.f32 %v703, 0.0
        %v736 = vmax.f32 %v704, 0.0
        %v737 = vmax.f32 %v705, 0.0
        %v738 = vmax.f32 %v706, 0.0
        %v739 = vmax.f32 %v707, 0.0
        %v740 = vmax.f32 %v708, 0.0
        %v741 = vmax.f32 %v709, 0.0
        %v742 = vmax.f32 %v710, 0.0
        %v743 = vmax.f32 %v711, 0.0
        %v744 = vmax.f32 %v712, 0.0
        %v745 = vmax.f32 %v713, 0.0
        %v746 = vmax.f32 %v714, 0.0
        %v747 = vmax.f32 %v715, 0.0
        %v748 = vmax.f32 %v716, 0.0
        %v749 = vmax.f32 %v717, 0.0
        %v750 = vmax.f32 %v718, 0.0
        %v751 = vmax.f32 %v719, 0.0
        %v752 = vmax.f32 %v720, 0.0
        %v753 = vmax.f32 %v721, 0.0
        %v754 = vmax.f32 %v722, 0.0
        %v755 = vmin.f32 %v723, 6.0
        %v756 = vmin.f32 %v724, 6.0
        %v757 = vmin.f32 %v725, 6.0
        %v758 = vmin.f32 %v726, 6.0
        %v759 = vmin.f32 %v727, 6.0
        %v760 = vmin.f32 %v728, 6.0
        %v761 = vmin.f32 %v729, 6.0
        %v762 = vmin.f32 %v730, 6.0
        %v763 = vmin.f32 %v731, 6.0
        %v764 = vmin.f32 %v732, 6.0
        %v765 = vmin.f32 %v733, 6.0
        %v766 = vmin.f32 %v734, 6.0
        %v767 = vmin.f32 %v735, 6.0
        %v768 = vmin.f32 %v736, 6.0
        %v769 = vmin.f32 %v737, 6.0
        %v770 = vmin.f32 %v738, 6.0
        %v771 = vmin.f32 %v739, 6.0
        %v772 = vmin.f32 %v740, 6.0
        %v773 = vmin.f32 %v741, 6.0
        %v774 = vmin.f32 %v742, 6.0
        %v775 = vmin.f32 %v743, 6.0
        %v776 = vmin.f32 %v744, 6.0
        %v777 = vmin.f32 %v745, 6.0
        %v778 = vmin.f32 %v746, 6.0
        %v779 = vmin.f32 %v747, 6.0
        %v780 = vmin.f32 %v748, 6.0
        %v781 = vmin.f32 %v749, 6.0
        %v782 = vmin.f32 %v750, 6.0
        %v783 = vmin.f32 %v751, 6.0
        %v784 = vmin.f32 %v752, 6.0
        %v785 = vmin.f32 %v753, 6.0
        %v786 = vmin.f32 %v754, 6.0
        %vm787 = vcmask 785408
        %788 = vst.msk [vmem:[#allocation2] sm:$0xff] %vm787, 0.0
        %789 = vst.msk [vmem:[#allocation2 + $0x8] sm:$0xff] %vm787, 0.0
        %vm790 = vcmask 779264
        %791 = vst.msk [vmem:[#allocation2 + $0x10] sm:$0x3] %vm790, 0.0
        %792 = vst.msk [vmem:[#allocation2 + $0x18] sm:$0xff] %vm787, 0.0
        %793 = vst.msk [vmem:[#allocation2 + $0x20] sm:$0xff] %vm787, 0.0
        %794 = vst.msk [vmem:[#allocation2 + $0x28] sm:$0x3] %vm790, 0.0
        %795 = vst.msk [vmem:[#allocation2 + $0x30] sm:$0xff] %vm787, 0.0
        %796 = vst.msk [vmem:[#allocation2 + $0x38] sm:$0xff] %vm787, 0.0
        %797 = vst.msk [vmem:[#allocation2 + $0x40] sm:$0x3] %vm790, 0.0
        %798 = vst.msk [vmem:[#allocation2 + $0x48] sm:$0xff] %vm787, 0.0
        %799 = vst.msk [vmem:[#allocation2 + $0x50] sm:$0xff] %vm787, 0.0
        %800 = vst.msk [vmem:[#allocation2 + $0x58] sm:$0x3] %vm790, 0.0
        %801 = vst.msk [vmem:[#allocation2 + $0x60] sm:$0xff] %vm787, 0.0
        %802 = vst.msk [vmem:[#allocation2 + $0x68] sm:$0xff] %vm787, 0.0
        %803 = vst.msk [vmem:[#allocation2 + $0x70] sm:$0x3] %vm790, 0.0
        %804 = vst.msk [vmem:[#allocation2 + $0x78] sm:$0xff] %vm787, 0.0
        %805 = vst.msk [vmem:[#allocation2 + $0x80] sm:$0xff] %vm787, 0.0
        %806 = vst.msk [vmem:[#allocation2 + $0x88] sm:$0x3] %vm790, 0.0
        %807 = vst.msk [vmem:[#allocation2 + $0x90] sm:$0xff] %vm787, 0.0
        %808 = vst.msk [vmem:[#allocation2 + $0x98] sm:$0xff] %vm787, 0.0
        %809 = vst.msk [vmem:[#allocation2 + $0xa0] sm:$0x3] %vm790, 0.0
        %810 = vst.msk [vmem:[#allocation2 + $0xa8] sm:$0xff] %vm787, 0.0
        %811 = vst.msk [vmem:[#allocation2 + $0xb0] sm:$0xff] %vm787, 0.0
        %812 = vst.msk [vmem:[#allocation2 + $0xb8] sm:$0x3] %vm790, 0.0
        %813 = vst.msk [vmem:[#allocation2 + $0xc0] sm:$0xff] %vm787, 0.0
        %814 = vst.msk [vmem:[#allocation2 + $0xc8] sm:$0xff] %vm787, 0.0
        %815 = vst.msk [vmem:[#allocation2 + $0xd0] sm:$0x3] %vm790, 0.0
        %816 = vst.msk [vmem:[#allocation2 + $0xd8] sm:$0xff] %vm787, 0.0
        %817 = vst.msk [vmem:[#allocation2 + $0xe0] sm:$0xff] %vm787, 0.0
        %818 = vst.msk [vmem:[#allocation2 + $0xe8] sm:$0x3] %vm790, 0.0
        %819 = vst.msk [vmem:[#allocation2 + $0xf0] sm:$0xff] %vm787, 0.0
        %820 = vst.msk [vmem:[#allocation2 + $0xf8] sm:$0xff] %vm787, 0.0
        %821 = vst.msk [vmem:[#allocation2 + $0x100] sm:$0x3] %vm790, 0.0
        %822 = vst.msk [vmem:[#allocation2 + $0x108] sm:$0xff] %vm787, 0.0
        %823 = vst.msk [vmem:[#allocation2 + $0x110] sm:$0xff] %vm787, 0.0
        %824 = vst.msk [vmem:[#allocation2 + $0x118] sm:$0x3] %vm790, 0.0
        %825 = vst.msk [vmem:[#allocation2 + $0x120] sm:$0xff] %vm787, 0.0
        %826 = vst.msk [vmem:[#allocation2 + $0x128] sm:$0xff] %vm787, 0.0
        %827 = vst.msk [vmem:[#allocation2 + $0x130] sm:$0x3] %vm790, 0.0
        %828 = vst.msk [vmem:[#allocation2 + $0x138] sm:$0xff] %vm787, 0.0
        %829 = vst.msk [vmem:[#allocation2 + $0x140] sm:$0xff] %vm787, 0.0
        %830 = vst.msk [vmem:[#allocation2 + $0x148] sm:$0x3] %vm790, 0.0
        %831 = vst.msk [vmem:[#allocation2 + $0x150] sm:$0xff] %vm787, 0.0
        %832 = vst.msk [vmem:[#allocation2 + $0x158] sm:$0xff] %vm787, 0.0
        %833 = vst.msk [vmem:[#allocation2 + $0x160] sm:$0x3] %vm790, 0.0
        %834 = vst.msk [vmem:[#allocation2 + $0x168] sm:$0xff] %vm787, 0.0
        %835 = vst.msk [vmem:[#allocation2 + $0x170] sm:$0xff] %vm787, 0.0
        %836 = vst.msk [vmem:[#allocation2 + $0x178] sm:$0x3] %vm790, 0.0
        %837 = vst.msk [vmem:[#allocation2 + $0x180] sm:$0xff] %vm787, 0.0
        %838 = vst.msk [vmem:[#allocation2 + $0x188] sm:$0xff] %vm787, 0.0
        %839 = vst.msk [vmem:[#allocation2 + $0x190] sm:$0x3] %vm790, 0.0
        %840 = vst.msk [vmem:[#allocation2 + $0x198] sm:$0xff] %vm787, 0.0
        %841 = vst.msk [vmem:[#allocation2 + $0x1a0] sm:$0xff] %vm787, 0.0
        %842 = vst.msk [vmem:[#allocation2 + $0x1a8] sm:$0x3] %vm790, 0.0
        %s843 = scalar_lea.vmem [#allocation2], 24
        %844 = vst.msk [vmem:[%s843 + $0x1] sm:$0xff] %vm787, %v755
        %845 = vst.msk [vmem:[%s843 + $0x9] sm:$0xff] %vm787, %v756
        %846 = vst.msk [vmem:[%s843 + $0x19] sm:$0xff] %vm787, %v757
        %847 = vst.msk [vmem:[%s843 + $0x21] sm:$0xff] %vm787, %v758
        %848 = vst.msk [vmem:[%s843 + $0x31] sm:$0xff] %vm787, %v759
        %849 = vst.msk [vmem:[%s843 + $0x39] sm:$0xff] %vm787, %v760
        %850 = vst.msk [vmem:[%s843 + $0x49] sm:$0xff] %vm787, %v761
        %851 = vst.msk [vmem:[%s843 + $0x51] sm:$0xff] %vm787, %v762
        %852 = vst.msk [vmem:[%s843 + $0x61] sm:$0xff] %vm787, %v763
        %853 = vst.msk [vmem:[%s843 + $0x69] sm:$0xff] %vm787, %v764
        %854 = vst.msk [vmem:[%s843 + $0x79] sm:$0xff] %vm787, %v765
        %855 = vst.msk [vmem:[%s843 + $0x81] sm:$0xff] %vm787, %v766
        %856 = vst.msk [vmem:[%s843 + $0x91] sm:$0xff] %vm787, %v767
        %857 = vst.msk [vmem:[%s843 + $0x99] sm:$0xff] %vm787, %v768
        %858 = vst.msk [vmem:[%s843 + $0xa9] sm:$0xff] %vm787, %v769
        %859 = vst.msk [vmem:[%s843 + $0xb1] sm:$0xff] %vm787, %v770
        %860 = vst.msk [vmem:[%s843 + $0xc1] sm:$0xff] %vm787, %v771
        %861 = vst.msk [vmem:[%s843 + $0xc9] sm:$0xff] %vm787, %v772
        %862 = vst.msk [vmem:[%s843 + $0xd9] sm:$0xff] %vm787, %v773
        %863 = vst.msk [vmem:[%s843 + $0xe1] sm:$0xff] %vm787, %v774
        %864 = vst.msk [vmem:[%s843 + $0xf1] sm:$0xff] %vm787, %v775
        %865 = vst.msk [vmem:[%s843 + $0xf9] sm:$0xff] %vm787, %v776
        %866 = vst.msk [vmem:[%s843 + $0x109] sm:$0xff] %vm787, %v777
        %867 = vst.msk [vmem:[%s843 + $0x111] sm:$0xff] %vm787, %v778
        %868 = vst.msk [vmem:[%s843 + $0x121] sm:$0xff] %vm787, %v779
        %869 = vst.msk [vmem:[%s843 + $0x129] sm:$0xff] %vm787, %v780
        %870 = vst.msk [vmem:[%s843 + $0x139] sm:$0xff] %vm787, %v781
        %871 = vst.msk [vmem:[%s843 + $0x141] sm:$0xff] %vm787, %v782
        %872 = vst.msk [vmem:[%s843 + $0x151] sm:$0xff] %vm787, %v783
        %873 = vst.msk [vmem:[%s843 + $0x159] sm:$0xff] %vm787, %v784
        %874 = vst.msk [vmem:[%s843 + $0x169] sm:$0xff] %vm787, %v785
        %875 = vst.msk [vmem:[%s843 + $0x171] sm:$0xff] %vm787, %v786
        %v876 = vld [vmem:[%s4] sm:$0x1]
        %v877 = vld [vmem:[#allocation2] sm:$0xff]
        %v878 = vld [vmem:[#allocation2 + $0x8] sm:$0xff]
        %v879 = vld [vmem:[#allocation2 + $0x18] sm:$0xff]
        %v880 = vld [vmem:[#allocation2 + $0x20] sm:$0xff]
        %v881 = vld [vmem:[#allocation2 + $0x30] sm:$0xff]
        %v882 = vld [vmem:[#allocation2 + $0x38] sm:$0xff]
        %v883 = vld [vmem:[#allocation2 + $0x48] sm:$0xff]
        %v884 = vld [vmem:[#allocation2 + $0x50] sm:$0xff]
        %v885 = vld [vmem:[#allocation2 + $0x60] sm:$0xff]
        %v886 = vld [vmem:[#allocation2 + $0x68] sm:$0xff]
        %v887 = vld [vmem:[#allocation2 + $0x78] sm:$0xff]
        %v888 = vld [vmem:[#allocation2 + $0x80] sm:$0xff]
        %v889 = vld [vmem:[#allocation2 + $0x90] sm:$0xff]
        %v890 = vld [vmem:[#allocation2 + $0x98] sm:$0xff]
        %v891 = vld [vmem:[#allocation2 + $0xa8] sm:$0xff]
        %v892 = vld [vmem:[#allocation2 + $0xb0] sm:$0xff]
        %v893 = vld [vmem:[#allocation2 + $0xc0] sm:$0xff]
        %v894 = vld [vmem:[#allocation2 + $0xc8] sm:$0xff]
        %v895 = vld [vmem:[#allocation2 + $0xd8] sm:$0xff]
        %v896 = vld [vmem:[#allocation2 + $0xe0] sm:$0xff]
        %v897 = vld [vmem:[#allocation2 + $0xf0] sm:$0xff]
        %v898 = vld [vmem:[#allocation2 + $0xf8] sm:$0xff]
        %v899 = vld [vmem:[#allocation2 + $0x108] sm:$0xff]
        %v900 = vld [vmem:[#allocation2 + $0x110] sm:$0xff]
        %v901 = vld [vmem:[#allocation2 + $0x120] sm:$0xff]
        %v902 = vld [vmem:[#allocation2 + $0x128] sm:$0xff]
        %v903 = vld [vmem:[#allocation2 + $0x138] sm:$0xff]
        %v904 = vld [vmem:[#allocation2 + $0x140] sm:$0xff]
        %v905 = vld [vmem:[#allocation2 + $0x150] sm:$0xff]
        %v906 = vld [vmem:[#allocation2 + $0x158] sm:$0xff]
        %v907 = vld [vmem:[#allocation2 + $0x168] sm:$0xff]
        %v908 = vld [vmem:[#allocation2 + $0x170] sm:$0xff]
        %v909 = vlaneseq
        %v910 = vshrl.u32 %v909, 7
        %v911 = vsub.s32 0, %v910
        %v912 = vrot.slane %v876, %v911
        %v913 = vmul.f32 %v912, %v877
        %v914 = vmul.f32 %v912, %v878
        %v915 = vmul.f32 %v912, %v879
        %v916 = vmul.f32 %v912, %v880
        %v917 = vmul.f32 %v912, %v881
        %v918 = vmul.f32 %v912, %v882
        %v919 = vmul.f32 %v912, %v883
        %v920 = vmul.f32 %v912, %v884
        %v921 = vmul.f32 %v912, %v885
        %v922 = vmul.f32 %v912, %v886
        %v923 = vmul.f32 %v912, %v887
        %v924 = vmul.f32 %v912, %v888
        %v925 = vmul.f32 %v912, %v889
        %v926 = vmul.f32 %v912, %v890
        %v927 = vmul.f32 %v912, %v891
        %v928 = vmul.f32 %v912, %v892
        %v929 = vmul.f32 %v912, %v893
        %v930 = vmul.f32 %v912, %v894
        %v931 = vmul.f32 %v912, %v895
        %v932 = vmul.f32 %v912, %v896
        %v933 = vmul.f32 %v912, %v897
        %v934 = vmul.f32 %v912, %v898
        %v935 = vmul.f32 %v912, %v899
        %v936 = vmul.f32 %v912, %v900
        %v937 = vmul.f32 %v912, %v901
        %v938 = vmul.f32 %v912, %v902
        %v939 = vmul.f32 %v912, %v903
        %v940 = vmul.f32 %v912, %v904
        %v941 = vmul.f32 %v912, %v905
        %v942 = vmul.f32 %v912, %v906
        %v943 = vmul.f32 %v912, %v907
        %v944 = vmul.f32 %v912, %v908
        %v945 = vadd.f32 %v913, 0.0
        %v946 = vadd.f32 %v914, 0.0
        %v947 = vadd.f32 %v915, 0.0
        %v948 = vadd.f32 %v916, 0.0
        %v949 = vadd.f32 %v917, 0.0
        %v950 = vadd.f32 %v918, 0.0
        %v951 = vadd.f32 %v919, 0.0
        %v952 = vadd.f32 %v920, 0.0
        %v953 = vadd.f32 %v921, 0.0
        %v954 = vadd.f32 %v922, 0.0
        %v955 = vadd.f32 %v923, 0.0
        %v956 = vadd.f32 %v924, 0.0
        %v957 = vadd.f32 %v925, 0.0
        %v958 = vadd.f32 %v926, 0.0
        %v959 = vadd.f32 %v927, 0.0
        %v960 = vadd.f32 %v928, 0.0
        %v961 = vadd.f32 %v929, 0.0
        %v962 = vadd.f32 %v930, 0.0
        %v963 = vadd.f32 %v931, 0.0
        %v964 = vadd.f32 %v932, 0.0
        %v965 = vadd.f32 %v933, 0.0
        %v966 = vadd.f32 %v934, 0.0
        %v967 = vadd.f32 %v935, 0.0
        %v968 = vadd.f32 %v936, 0.0
        %v969 = vadd.f32 %v937, 0.0
        %v970 = vadd.f32 %v938, 0.0
        %v971 = vadd.f32 %v939, 0.0
        %v972 = vadd.f32 %v940, 0.0
        %v973 = vadd.f32 %v941, 0.0
        %v974 = vadd.f32 %v942, 0.0
        %v975 = vadd.f32 %v943, 0.0
        %v976 = vadd.f32 %v944, 0.0
        %v977 = vld [vmem:[%s4 + $0x1] sm:$0x1]
        %v978 = vld [vmem:[#allocation2 + $0x1] sm:$0xff]
        %v979 = vld [vmem:[#allocation2 + $0x9] sm:$0xff]
        %v980 = vld [vmem:[#allocation2 + $0x19] sm:$0xff]
        %v981 = vld [vmem:[#allocation2 + $0x21] sm:$0xff]
        %v982 = vld [vmem:[#allocation2 + $0x31] sm:$0xff]
        %v983 = vld [vmem:[#allocation2 + $0x39] sm:$0xff]
        %v984 = vld [vmem:[#allocation2 + $0x49] sm:$0xff]
        %v985 = vld [vmem:[#allocation2 + $0x51] sm:$0xff]
        %v986 = vld [vmem:[#allocation2 + $0x61] sm:$0xff]
        %v987 = vld [vmem:[#allocation2 + $0x69] sm:$0xff]
        %v988 = vld [vmem:[#allocation2 + $0x79] sm:$0xff]
        %v989 = vld [vmem:[#allocation2 + $0x81] sm:$0xff]
        %v990 = vld [vmem:[#allocation2 + $0x91] sm:$0xff]
        %v991 = vld [vmem:[#allocation2 + $0x99] sm:$0xff]
        %v992 = vld [vmem:[#allocation2 + $0xa9] sm:$0xff]
        %v993 = vld [vmem:[#allocation2 + $0xb1] sm:$0xff]
        %v994 = vld [vmem:[#allocation2 + $0xc1] sm:$0xff]
        %v995 = vld [vmem:[#allocation2 + $0xc9] sm:$0xff]
        %v996 = vld [vmem:[#allocation2 + $0xd9] sm:$0xff]
        %v997 = vld [vmem:[#allocation2 + $0xe1] sm:$0xff]
        %v998 = vld [vmem:[#allocation2 + $0xf1] sm:$0xff]
        %v999 = vld [vmem:[#allocation2 + $0xf9] sm:$0xff]
        %v1000 = vld [vmem:[#allocation2 + $0x109] sm:$0xff]
        %v1001 = vld [vmem:[#allocation2 + $0x111] sm:$0xff]
        %v1002 = vld [vmem:[#allocation2 + $0x121] sm:$0xff]
        %v1003 = vld [vmem:[#allocation2 + $0x129] sm:$0xff]
        %v1004 = vld [vmem:[#allocation2 + $0x139] sm:$0xff]
        %v1005 = vld [vmem:[#allocation2 + $0x141] sm:$0xff]
        %v1006 = vld [vmem:[#allocation2 + $0x151] sm:$0xff]
        %v1007 = vld [vmem:[#allocation2 + $0x159] sm:$0xff]
        %v1008 = vld [vmem:[#allocation2 + $0x169] sm:$0xff]
        %v1009 = vld [vmem:[#allocation2 + $0x171] sm:$0xff]
        %v1010 = vlaneseq
        %v1011 = vshrl.u32 %v1010, 7
        %v1012 = vsub.s32 0, %v1011
        %v1013 = vrot.slane %v977, %v1012
        %v1014 = vmul.f32 %v1013, %v978
        %v1015 = vmul.f32 %v1013, %v979
        %v1016 = vmul.f32 %v1013, %v980
        %v1017 = vmul.f32 %v1013, %v981
        %v1018 = vmul.f32 %v1013, %v982
        %v1019 = vmul.f32 %v1013, %v983
        %v1020 = vmul.f32 %v1013, %v984
        %v1021 = vmul.f32 %v1013, %v985
        %v1022 = vmul.f32 %v1013, %v986
        %v1023 = vmul.f32 %v1013, %v987
        %v1024 = vmul.f32 %v1013, %v988
        %v1025 = vmul.f32 %v1013, %v989
        %v1026 = vmul.f32 %v1013, %v990
        %v1027 = vmul.f32 %v1013, %v991
        %v1028 = vmul.f32 %v1013, %v992
        %v1029 = vmul.f32 %v1013, %v993
        %v1030 = vmul.f32 %v1013, %v994
        %v1031 = vmul.f32 %v1013, %v995
        %v1032 = vmul.f32 %v1013, %v996
        %v1033 = vmul.f32 %v1013, %v997
        %v1034 = vmul.f32 %v1013, %v998
        %v1035 = vmul.f32 %v1013, %v999
        %v1036 = vmul.f32 %v1013, %v1000
        %v1037 = vmul.f32 %v1013, %v1001
        %v1038 = vmul.f32 %v1013, %v1002
        %v1039 = vmul.f32 %v1013, %v1003
        %v1040 = vmul.f32 %v1013, %v1004
        %v1041 = vmul.f32 %v1013, %v1005
        %v1042 = vmul.f32 %v1013, %v1006
        %v1043 = vmul.f32 %v1013, %v1007
        %v1044 = vmul.f32 %v1013, %v1008
        %v1045 = vmul.f32 %v1013, %v1009
        %v1046 = vadd.f32 %v945, %v1014
        %v1047 = vadd.f32 %v946, %v1015
        %v1048 = vadd.f32 %v947, %v1016
        %v1049 = vadd.f32 %v948, %v1017
        %v1050 = vadd.f32 %v949, %v1018
        %v1051 = vadd.f32 %v950, %v1019
        %v1052 = vadd.f32 %v951, %v1020
        %v1053 = vadd.f32 %v952, %v1021
        %v1054 = vadd.f32 %v953, %v1022
        %v1055 = vadd.f32 %v954, %v1023
        %v1056 = vadd.f32 %v955, %v1024
        %v1057 = vadd.f32 %v956, %v1025
        %v1058 = vadd.f32 %v957, %v1026
        %v1059 = vadd.f32 %v958, %v1027
        %v1060 = vadd.f32 %v959, %v1028
        %v1061 = vadd.f32 %v960, %v1029
        %v1062 = vadd.f32 %v961, %v1030
        %v1063 = vadd.f32 %v962, %v1031
        %v1064 = vadd.f32 %v963, %v1032
        %v1065 = vadd.f32 %v964, %v1033
        %v1066 = vadd.f32 %v965, %v1034
        %v1067 = vadd.f32 %v966, %v1035
        %v1068 = vadd.f32 %v967, %v1036
        %v1069 = vadd.f32 %v968, %v1037
        %v1070 = vadd.f32 %v969, %v1038
        %v1071 = vadd.f32 %v970, %v1039
        %v1072 = vadd.f32 %v971, %v1040
        %v1073 = vadd.f32 %v972, %v1041
        %v1074 = vadd.f32 %v973, %v1042
        %v1075 = vadd.f32 %v974, %v1043
        %v1076 = vadd.f32 %v975, %v1044
        %v1077 = vadd.f32 %v976, %v1045
        %v1078 = vld [vmem:[%s4 + $0x2] sm:$0x1]
        %v1079 = vld [vmem:[#allocation2 + $0x2] sm:$0xff]
        %v1080 = vld [vmem:[#allocation2 + $0xa] sm:$0xff]
        %v1081 = vld [vmem:[#allocation2 + $0x1a] sm:$0xff]
        %v1082 = vld [vmem:[#allocation2 + $0x22] sm:$0xff]
        %v1083 = vld [vmem:[#allocation2 + $0x32] sm:$0xff]
        %v1084 = vld [vmem:[#allocation2 + $0x3a] sm:$0xff]
        %v1085 = vld [vmem:[#allocation2 + $0x4a] sm:$0xff]
        %v1086 = vld [vmem:[#allocation2 + $0x52] sm:$0xff]
        %v1087 = vld [vmem:[#allocation2 + $0x62] sm:$0xff]
        %v1088 = vld [vmem:[#allocation2 + $0x6a] sm:$0xff]
        %v1089 = vld [vmem:[#allocation2 + $0x7a] sm:$0xff]
        %v1090 = vld [vmem:[#allocation2 + $0x82] sm:$0xff]
        %v1091 = vld [vmem:[#allocation2 + $0x92] sm:$0xff]
        %v1092 = vld [vmem:[#allocation2 + $0x9a] sm:$0xff]
        %v1093 = vld [vmem:[#allocation2 + $0xaa] sm:$0xff]
        %v1094 = vld [vmem:[#allocation2 + $0xb2] sm:$0xff]
        %v1095 = vld [vmem:[#allocation2 + $0xc2] sm:$0xff]
        %v1096 = vld [vmem:[#allocation2 + $0xca] sm:$0xff]
        %v1097 = vld [vmem:[#allocation2 + $0xda] sm:$0xff]
        %v1098 = vld [vmem:[#allocation2 + $0xe2] sm:$0xff]
        %v1099 = vld [vmem:[#allocation2 + $0xf2] sm:$0xff]
        %v1100 = vld [vmem:[#allocation2 + $0xfa] sm:$0xff]
        %v1101 = vld [vmem:[#allocation2 + $0x10a] sm:$0xff]
        %v1102 = vld [vmem:[#allocation2 + $0x112] sm:$0xff]
        %v1103 = vld [vmem:[#allocation2 + $0x122] sm:$0xff]
        %v1104 = vld [vmem:[#allocation2 + $0x12a] sm:$0xff]
        %v1105 = vld [vmem:[#allocation2 + $0x13a] sm:$0xff]
        %v1106 = vld [vmem:[#allocation2 + $0x142] sm:$0xff]
        %v1107 = vld [vmem:[#allocation2 + $0x152] sm:$0xff]
        %v1108 = vld [vmem:[#allocation2 + $0x15a] sm:$0xff]
        %v1109 = vld [vmem:[#allocation2 + $0x16a] sm:$0xff]
        %v1110 = vld [vmem:[#allocation2 + $0x172] sm:$0xff]
        %v1111 = vlaneseq
        %v1112 = vshrl.u32 %v1111, 7
        %v1113 = vsub.s32 0, %v1112
        %v1114 = vrot.slane %v1078, %v1113
        %v1115 = vmul.f32 %v1114, %v1079
        %v1116 = vmul.f32 %v1114, %v1080
        %v1117 = vmul.f32 %v1114, %v1081
        %v1118 = vmul.f32 %v1114, %v1082
        %v1119 = vmul.f32 %v1114, %v1083
        %v1120 = vmul.f32 %v1114, %v1084
        %v1121 = vmul.f32 %v1114, %v1085
        %v1122 = vmul.f32 %v1114, %v1086
        %v1123 = vmul.f32 %v1114, %v1087
        %v1124 = vmul.f32 %v1114, %v1088
        %v1125 = vmul.f32 %v1114, %v1089
        %v1126 = vmul.f32 %v1114, %v1090
        %v1127 = vmul.f32 %v1114, %v1091
        %v1128 = vmul.f32 %v1114, %v1092
        %v1129 = vmul.f32 %v1114, %v1093
        %v1130 = vmul.f32 %v1114, %v1094
        %v1131 = vmul.f32 %v1114, %v1095
        %v1132 = vmul.f32 %v1114, %v1096
        %v1133 = vmul.f32 %v1114, %v1097
        %v1134 = vmul.f32 %v1114, %v1098
        %v1135 = vmul.f32 %v1114, %v1099
        %v1136 = vmul.f32 %v1114, %v1100
        %v1137 = vmul.f32 %v1114, %v1101
        %v1138 = vmul.f32 %v1114, %v1102
        %v1139 = vmul.f32 %v1114, %v1103
        %v1140 = vmul.f32 %v1114, %v1104
        %v1141 = vmul.f32 %v1114, %v1105
        %v1142 = vmul.f32 %v1114, %v1106
        %v1143 = vmul.f32 %v1114, %v1107
        %v1144 = vmul.f32 %v1114, %v1108
        %v1145 = vmul.f32 %v1114, %v1109
        %v1146 = vmul.f32 %v1114, %v1110
        %v1147 = vadd.f32 %v1046, %v1115
        %v1148 = vadd.f32 %v1047, %v1116
        %v1149 = vadd.f32 %v1048, %v1117
        %v1150 = vadd.f32 %v1049, %v1118
        %v1151 = vadd.f32 %v1050, %v1119
        %v1152 = vadd.f32 %v1051, %v1120
        %v1153 = vadd.f32 %v1052, %v1121
        %v1154 = vadd.f32 %v1053, %v1122
        %v1155 = vadd.f32 %v1054, %v1123
        %v1156 = vadd.f32 %v1055, %v1124
        %v1157 = vadd.f32 %v1056, %v1125
        %v1158 = vadd.f32 %v1057, %v1126
        %v1159 = vadd.f32 %v1058, %v1127
        %v1160 = vadd.f32 %v1059, %v1128
        %v1161 = vadd.f32 %v1060, %v1129
        %v1162 = vadd.f32 %v1061, %v1130
        %v1163 = vadd.f32 %v1062, %v1131
        %v1164 = vadd.f32 %v1063, %v1132
        %v1165 = vadd.f32 %v1064, %v1133
        %v1166 = vadd.f32 %v1065, %v1134
        %v1167 = vadd.f32 %v1066, %v1135
        %v1168 = vadd.f32 %v1067, %v1136
        %v1169 = vadd.f32 %v1068, %v1137
        %v1170 = vadd.f32 %v1069, %v1138
        %v1171 = vadd.f32 %v1070, %v1139
        %v1172 = vadd.f32 %v1071, %v1140
        %v1173 = vadd.f32 %v1072, %v1141
        %v1174 = vadd.f32 %v1073, %v1142
        %v1175 = vadd.f32 %v1074, %v1143
        %v1176 = vadd.f32 %v1075, %v1144
        %v1177 = vadd.f32 %v1076, %v1145
        %v1178 = vadd.f32 %v1077, %v1146
        %v1179 = vld [vmem:[%s4 + $0x3] sm:$0x1]
        %v1180 = vld [vmem:[%s843] sm:$0xff]
        %v1181 = vld [vmem:[%s843 + $0x8] sm:$0xff]
        %v1182 = vld [vmem:[%s843 + $0x18] sm:$0xff]
        %v1183 = vld [vmem:[%s843 + $0x20] sm:$0xff]
        %v1184 = vld [vmem:[%s843 + $0x30] sm:$0xff]
        %v1185 = vld [vmem:[%s843 + $0x38] sm:$0xff]
        %v1186 = vld [vmem:[%s843 + $0x48] sm:$0xff]
        %v1187 = vld [vmem:[%s843 + $0x50] sm:$0xff]
        %v1188 = vld [vmem:[%s843 + $0x60] sm:$0xff]
        %v1189 = vld [vmem:[%s843 + $0x68] sm:$0xff]
        %v1190 = vld [vmem:[%s843 + $0x78] sm:$0xff]
        %v1191 = vld [vmem:[%s843 + $0x80] sm:$0xff]
        %v1192 = vld [vmem:[%s843 + $0x90] sm:$0xff]
        %v1193 = vld [vmem:[%s843 + $0x98] sm:$0xff]
        %v1194 = vld [vmem:[%s843 + $0xa8] sm:$0xff]
        %v1195 = vld [vmem:[%s843 + $0xb0] sm:$0xff]
        %v1196 = vld [vmem:[%s843 + $0xc0] sm:$0xff]
        %v1197 = vld [vmem:[%s843 + $0xc8] sm:$0xff]
        %v1198 = vld [vmem:[%s843 + $0xd8] sm:$0xff]
        %v1199 = vld [vmem:[%s843 + $0xe0] sm:$0xff]
        %v1200 = vld [vmem:[%s843 + $0xf0] sm:$0xff]
        %v1201 = vld [vmem:[%s843 + $0xf8] sm:$0xff]
        %v1202 = vld [vmem:[%s843 + $0x108] sm:$0xff]
        %v1203 = vld [vmem:[%s843 + $0x110] sm:$0xff]
        %v1204 = vld [vmem:[%s843 + $0x120] sm:$0xff]
        %v1205 = vld [vmem:[%s843 + $0x128] sm:$0xff]
        %v1206 = vld [vmem:[%s843 + $0x138] sm:$0xff]
        %v1207 = vld [vmem:[%s843 + $0x140] sm:$0xff]
        %v1208 = vld [vmem:[%s843 + $0x150] sm:$0xff]
        %v1209 = vld [vmem:[%s843 + $0x158] sm:$0xff]
        %v1210 = vld [vmem:[%s843 + $0x168] sm:$0xff]
        %v1211 = vld [vmem:[%s843 + $0x170] sm:$0xff]
        %v1212 = vlaneseq
        %v1213 = vshrl.u32 %v1212, 7
        %v1214 = vsub.s32 0, %v1213
        %v1215 = vrot.slane %v1179, %v1214
        %v1216 = vmul.f32 %v1215, %v1180
        %v1217 = vmul.f32 %v1215, %v1181
        %v1218 = vmul.f32 %v1215, %v1182
        %v1219 = vmul.f32 %v1215, %v1183
        %v1220 = vmul.f32 %v1215, %v1184
        %v1221 = vmul.f32 %v1215, %v1185
        %v1222 = vmul.f32 %v1215, %v1186
        %v1223 = vmul.f32 %v1215, %v1187
        %v1224 = vmul.f32 %v1215, %v1188
        %v1225 = vmul.f32 %v1215, %v1189
        %v1226 = vmul.f32 %v1215, %v1190
        %v1227 = vmul.f32 %v1215, %v1191
        %v1228 = vmul.f32 %v1215, %v1192
        %v1229 = vmul.f32 %v1215, %v1193
        %v1230 = vmul.f32 %v1215, %v1194
        %v1231 = vmul.f32 %v1215, %v1195
        %v1232 = vmul.f32 %v1215, %v1196
        %v1233 = vmul.f32 %v1215, %v1197
        %v1234 = vmul.f32 %v1215, %v1198
        %v1235 = vmul.f32 %v1215, %v1199
        %v1236 = vmul.f32 %v1215, %v1200
        %v1237 = vmul.f32 %v1215, %v1201
        %v1238 = vmul.f32 %v1215, %v1202
        %v1239 = vmul.f32 %v1215, %v1203
        %v1240 = vmul.f32 %v1215, %v1204
        %v1241 = vmul.f32 %v1215, %v1205
        %v1242 = vmul.f32 %v1215, %v1206
        %v1243 = vmul.f32 %v1215, %v1207
        %v1244 = vmul.f32 %v1215, %v1208
        %v1245 = vmul.f32 %v1215, %v1209
        %v1246 = vmul.f32 %v1215, %v1210
        %v1247 = vmul.f32 %v1215, %v1211
        %v1248 = vadd.f32 %v1147, %v1216
        %v1249 = vadd.f32 %v1148, %v1217
        %v1250 = vadd.f32 %v1149, %v1218
        %v1251 = vadd.f32 %v1150, %v1219
        %v1252 = vadd.f32 %v1151, %v1220
        %v1253 = vadd.f32 %v1152, %v1221
        %v1254 = vadd.f32 %v1153, %v1222
        %v1255 = vadd.f32 %v1154, %v1223
        %v1256 = vadd.f32 %v1155, %v1224
        %v1257 = vadd.f32 %v1156, %v1225
        %v1258 = vadd.f32 %v1157, %v1226
        %v1259 = vadd.f32 %v1158, %v1227
        %v1260 = vadd.f32 %v1159, %v1228
        %v1261 = vadd.f32 %v1160, %v1229
        %v1262 = vadd.f32 %v1161, %v1230
        %v1263 = vadd.f32 %v1162, %v1231
        %v1264 = vadd.f32 %v1163, %v1232
        %v1265 = vadd.f32 %v1164, %v1233
        %v1266 = vadd.f32 %v1165, %v1234
        %v1267 = vadd.f32 %v1166, %v1235
        %v1268 = vadd.f32 %v1167, %v1236
        %v1269 = vadd.f32 %v1168, %v1237
        %v1270 = vadd.f32 %v1169, %v1238
        %v1271 = vadd.f32 %v1170, %v1239
        %v1272 = vadd.f32 %v1171, %v1240
        %v1273 = vadd.f32 %v1172, %v1241
        %v1274 = vadd.f32 %v1173, %v1242
        %v1275 = vadd.f32 %v1174, %v1243
        %v1276 = vadd.f32 %v1175, %v1244
        %v1277 = vadd.f32 %v1176, %v1245
        %v1278 = vadd.f32 %v1177, %v1246
        %v1279 = vadd.f32 %v1178, %v1247
        %v1280 = vld [vmem:[%s4 + $0x4] sm:$0x1]
        %v1281 = vld [vmem:[%s843 + $0x1] sm:$0xff]
        %v1282 = vld [vmem:[%s843 + $0x9] sm:$0xff]
        %v1283 = vld [vmem:[%s843 + $0x19] sm:$0xff]
        %v1284 = vld [vmem:[%s843 + $0x21] sm:$0xff]
        %v1285 = vld [vmem:[%s843 + $0x31] sm:$0xff]
        %v1286 = vld [vmem:[%s843 + $0x39] sm:$0xff]
        %v1287 = vld [vmem:[%s843 + $0x49] sm:$0xff]
        %v1288 = vld [vmem:[%s843 + $0x51] sm:$0xff]
        %v1289 = vld [vmem:[%s843 + $0x61] sm:$0xff]
        %v1290 = vld [vmem:[%s843 + $0x69] sm:$0xff]
        %v1291 = vld [vmem:[%s843 + $0x79] sm:$0xff]
        %v1292 = vld [vmem:[%s843 + $0x81] sm:$0xff]
        %v1293 = vld [vmem:[%s843 + $0x91] sm:$0xff]
        %v1294 = vld [vmem:[%s843 + $0x99] sm:$0xff]
        %v1295 = vld [vmem:[%s843 + $0xa9] sm:$0xff]
        %v1296 = vld [vmem:[%s843 + $0xb1] sm:$0xff]
        %v1297 = vld [vmem:[%s843 + $0xc1] sm:$0xff]
        %v1298 = vld [vmem:[%s843 + $0xc9] sm:$0xff]
        %v1299 = vld [vmem:[%s843 + $0xd9] sm:$0xff]
        %v1300 = vld [vmem:[%s843 + $0xe1] sm:$0xff]
        %v1301 = vld [vmem:[%s843 + $0xf1] sm:$0xff]
        %v1302 = vld [vmem:[%s843 + $0xf9] sm:$0xff]
        %v1303 = vld [vmem:[%s843 + $0x109] sm:$0xff]
        %v1304 = vld [vmem:[%s843 + $0x111] sm:$0xff]
        %v1305 = vld [vmem:[%s843 + $0x121] sm:$0xff]
        %v1306 = vld [vmem:[%s843 + $0x129] sm:$0xff]
        %v1307 = vld [vmem:[%s843 + $0x139] sm:$0xff]
        %v1308 = vld [vmem:[%s843 + $0x141] sm:$0xff]
        %v1309 = vld [vmem:[%s843 + $0x151] sm:$0xff]
        %v1310 = vld [vmem:[%s843 + $0x159] sm:$0xff]
        %v1311 = vld [vmem:[%s843 + $0x169] sm:$0xff]
        %v1312 = vld [vmem:[%s843 + $0x171] sm:$0xff]
        %v1313 = vlaneseq
        %v1314 = vshrl.u32 %v1313, 7
        %v1315 = vsub.s32 0, %v1314
        %v1316 = vrot.slane %v1280, %v1315
        %v1317 = vmul.f32 %v1316, %v1281
        %v1318 = vmul.f32 %v1316, %v1282
        %v1319 = vmul.f32 %v1316, %v1283
        %v1320 = vmul.f32 %v1316, %v1284
        %v1321 = vmul.f32 %v1316, %v1285
        %v1322 = vmul.f32 %v1316, %v1286
        %v1323 = vmul.f32 %v1316, %v1287
        %v1324 = vmul.f32 %v1316, %v1288
        %v1325 = vmul.f32 %v1316, %v1289
        %v1326 = vmul.f32 %v1316, %v1290
        %v1327 = vmul.f32 %v1316, %v1291
        %v1328 = vmul.f32 %v1316, %v1292
        %v1329 = vmul.f32 %v1316, %v1293
        %v1330 = vmul.f32 %v1316, %v1294
        %v1331 = vmul.f32 %v1316, %v1295
        %v1332 = vmul.f32 %v1316, %v1296
        %v1333 = vmul.f32 %v1316, %v1297
        %v1334 = vmul.f32 %v1316, %v1298
        %v1335 = vmul.f32 %v1316, %v1299
        %v1336 = vmul.f32 %v1316, %v1300
        %v1337 = vmul.f32 %v1316, %v1301
        %v1338 = vmul.f32 %v1316, %v1302
        %v1339 = vmul.f32 %v1316, %v1303
        %v1340 = vmul.f32 %v1316, %v1304
        %v1341 = vmul.f32 %v1316, %v1305
        %v1342 = vmul.f32 %v1316, %v1306
        %v1343 = vmul.f32 %v1316, %v1307
        %v1344 = vmul.f32 %v1316, %v1308
        %v1345 = vmul.f32 %v1316, %v1309
        %v1346 = vmul.f32 %v1316, %v1310
        %v1347 = vmul.f32 %v1316, %v1311
        %v1348 = vmul.f32 %v1316, %v1312
        %v1349 = vadd.f32 %v1248, %v1317
        %v1350 = vadd.f32 %v1249, %v1318
        %v1351 = vadd.f32 %v1250, %v1319
        %v1352 = vadd.f32 %v1251, %v1320
        %v1353 = vadd.f32 %v1252, %v1321
        %v1354 = vadd.f32 %v1253, %v1322
        %v1355 = vadd.f32 %v1254, %v1323
        %v1356 = vadd.f32 %v1255, %v1324
        %v1357 = vadd.f32 %v1256, %v1325
        %v1358 = vadd.f32 %v1257, %v1326
        %v1359 = vadd.f32 %v1258, %v1327
        %v1360 = vadd.f32 %v1259, %v1328
        %v1361 = vadd.f32 %v1260, %v1329
        %v1362 = vadd.f32 %v1261, %v1330
        %v1363 = vadd.f32 %v1262, %v1331
        %v1364 = vadd.f32 %v1263, %v1332
        %v1365 = vadd.f32 %v1264, %v1333
        %v1366 = vadd.f32 %v1265, %v1334
        %v1367 = vadd.f32 %v1266, %v1335
        %v1368 = vadd.f32 %v1267, %v1336
        %v1369 = vadd.f32 %v1268, %v1337
        %v1370 = vadd.f32 %v1269, %v1338
        %v1371 = vadd.f32 %v1270, %v1339
        %v1372 = vadd.f32 %v1271, %v1340
        %v1373 = vadd.f32 %v1272, %v1341
        %v1374 = vadd.f32 %v1273, %v1342
        %v1375 = vadd.f32 %v1274, %v1343
        %v1376 = vadd.f32 %v1275, %v1344
        %v1377 = vadd.f32 %v1276, %v1345
        %v1378 = vadd.f32 %v1277, %v1346
        %v1379 = vadd.f32 %v1278, %v1347
        %v1380 = vadd.f32 %v1279, %v1348
        %v1381 = vld [vmem:[%s4 + $0x5] sm:$0x1]
        %v1382 = vld [vmem:[%s843 + $0x2] sm:$0xff]
        %v1383 = vld [vmem:[%s843 + $0xa] sm:$0xff]
        %v1384 = vld [vmem:[%s843 + $0x1a] sm:$0xff]
        %v1385 = vld [vmem:[%s843 + $0x22] sm:$0xff]
        %v1386 = vld [vmem:[%s843 + $0x32] sm:$0xff]
        %v1387 = vld [vmem:[%s843 + $0x3a] sm:$0xff]
        %v1388 = vld [vmem:[%s843 + $0x4a] sm:$0xff]
        %v1389 = vld [vmem:[%s843 + $0x52] sm:$0xff]
        %v1390 = vld [vmem:[%s843 + $0x62] sm:$0xff]
        %v1391 = vld [vmem:[%s843 + $0x6a] sm:$0xff]
        %v1392 = vld [vmem:[%s843 + $0x7a] sm:$0xff]
        %v1393 = vld [vmem:[%s843 + $0x82] sm:$0xff]
        %v1394 = vld [vmem:[%s843 + $0x92] sm:$0xff]
        %v1395 = vld [vmem:[%s843 + $0x9a] sm:$0xff]
        %v1396 = vld [vmem:[%s843 + $0xaa] sm:$0xff]
        %v1397 = vld [vmem:[%s843 + $0xb2] sm:$0xff]
        %v1398 = vld [vmem:[%s843 + $0xc2] sm:$0xff]
        %v1399 = vld [vmem:[%s843 + $0xca] sm:$0xff]
        %v1400 = vld [vmem:[%s843 + $0xda] sm:$0xff]
        %v1401 = vld [vmem:[%s843 + $0xe2] sm:$0xff]
        %v1402 = vld [vmem:[%s843 + $0xf2] sm:$0xff]
        %v1403 = vld [vmem:[%s843 + $0xfa] sm:$0xff]
        %v1404 = vld [vmem:[%s843 + $0x10a] sm:$0xff]
        %v1405 = vld [vmem:[%s843 + $0x112] sm:$0xff]
        %v1406 = vld [vmem:[%s843 + $0x122] sm:$0xff]
        %v1407 = vld [vmem:[%s843 + $0x12a] sm:$0xff]
        %v1408 = vld [vmem:[%s843 + $0x13a] sm:$0xff]
        %v1409 = vld [vmem:[%s843 + $0x142] sm:$0xff]
        %v1410 = vld [vmem:[%s843 + $0x152] sm:$0xff]
        %v1411 = vld [vmem:[%s843 + $0x15a] sm:$0xff]
        %v1412 = vld [vmem:[%s843 + $0x16a] sm:$0xff]
        %v1413 = vld [vmem:[%s843 + $0x172] sm:$0xff]
        %v1414 = vlaneseq
        %v1415 = vshrl.u32 %v1414, 7
        %v1416 = vsub.s32 0, %v1415
        %v1417 = vrot.slane %v1381, %v1416
        %v1418 = vmul.f32 %v1417, %v1382
        %v1419 = vmul.f32 %v1417, %v1383
        %v1420 = vmul.f32 %v1417, %v1384
        %v1421 = vmul.f32 %v1417, %v1385
        %v1422 = vmul.f32 %v1417, %v1386
        %v1423 = vmul.f32 %v1417, %v1387
        %v1424 = vmul.f32 %v1417, %v1388
        %v1425 = vmul.f32 %v1417, %v1389
        %v1426 = vmul.f32 %v1417, %v1390
        %v1427 = vmul.f32 %v1417, %v1391
        %v1428 = vmul.f32 %v1417, %v1392
        %v1429 = vmul.f32 %v1417, %v1393
        %v1430 = vmul.f32 %v1417, %v1394
        %v1431 = vmul.f32 %v1417, %v1395
        %v1432 = vmul.f32 %v1417, %v1396
        %v1433 = vmul.f32 %v1417, %v1397
        %v1434 = vmul.f32 %v1417, %v1398
        %v1435 = vmul.f32 %v1417, %v1399
        %v1436 = vmul.f32 %v1417, %v1400
        %v1437 = vmul.f32 %v1417, %v1401
        %v1438 = vmul.f32 %v1417, %v1402
        %v1439 = vmul.f32 %v1417, %v1403
        %v1440 = vmul.f32 %v1417, %v1404
        %v1441 = vmul.f32 %v1417, %v1405
        %v1442 = vmul.f32 %v1417, %v1406
        %v1443 = vmul.f32 %v1417, %v1407
        %v1444 = vmul.f32 %v1417, %v1408
        %v1445 = vmul.f32 %v1417, %v1409
        %v1446 = vmul.f32 %v1417, %v1410
        %v1447 = vmul.f32 %v1417, %v1411
        %v1448 = vmul.f32 %v1417, %v1412
        %v1449 = vmul.f32 %v1417, %v1413
        %v1450 = vadd.f32 %v1349, %v1418
        %v1451 = vadd.f32 %v1350, %v1419
        %v1452 = vadd.f32 %v1351, %v1420
        %v1453 = vadd.f32 %v1352, %v1421
        %v1454 = vadd.f32 %v1353, %v1422
        %v1455 = vadd.f32 %v1354, %v1423
        %v1456 = vadd.f32 %v1355, %v1424
        %v1457 = vadd.f32 %v1356, %v1425
        %v1458 = vadd.f32 %v1357, %v1426
        %v1459 = vadd.f32 %v1358, %v1427
        %v1460 = vadd.f32 %v1359, %v1428
        %v1461 = vadd.f32 %v1360, %v1429
        %v1462 = vadd.f32 %v1361, %v1430
        %v1463 = vadd.f32 %v1362, %v1431
        %v1464 = vadd.f32 %v1363, %v1432
        %v1465 = vadd.f32 %v1364, %v1433
        %v1466 = vadd.f32 %v1365, %v1434
        %v1467 = vadd.f32 %v1366, %v1435
        %v1468 = vadd.f32 %v1367, %v1436
        %v1469 = vadd.f32 %v1368, %v1437
        %v1470 = vadd.f32 %v1369, %v1438
        %v1471 = vadd.f32 %v1370, %v1439
        %v1472 = vadd.f32 %v1371, %v1440
        %v1473 = vadd.f32 %v1372, %v1441
        %v1474 = vadd.f32 %v1373, %v1442
        %v1475 = vadd.f32 %v1374, %v1443
        %v1476 = vadd.f32 %v1375, %v1444
        %v1477 = vadd.f32 %v1376, %v1445
        %v1478 = vadd.f32 %v1377, %v1446
        %v1479 = vadd.f32 %v1378, %v1447
        %v1480 = vadd.f32 %v1379, %v1448
        %v1481 = vadd.f32 %v1380, %v1449
        %v1482 = vld [vmem:[%s4 + $0x6] sm:$0x1]
        %s1483 = scalar_lea.vmem [#allocation2], 48
        %v1484 = vld [vmem:[%s1483] sm:$0xff]
        %v1485 = vld [vmem:[%s1483 + $0x8] sm:$0xff]
        %v1486 = vld [vmem:[%s1483 + $0x18] sm:$0xff]
        %v1487 = vld [vmem:[%s1483 + $0x20] sm:$0xff]
        %v1488 = vld [vmem:[%s1483 + $0x30] sm:$0xff]
        %v1489 = vld [vmem:[%s1483 + $0x38] sm:$0xff]
        %v1490 = vld [vmem:[%s1483 + $0x48] sm:$0xff]
        %v1491 = vld [vmem:[%s1483 + $0x50] sm:$0xff]
        %v1492 = vld [vmem:[%s1483 + $0x60] sm:$0xff]
        %v1493 = vld [vmem:[%s1483 + $0x68] sm:$0xff]
        %v1494 = vld [vmem:[%s1483 + $0x78] sm:$0xff]
        %v1495 = vld [vmem:[%s1483 + $0x80] sm:$0xff]
        %v1496 = vld [vmem:[%s1483 + $0x90] sm:$0xff]
        %v1497 = vld [vmem:[%s1483 + $0x98] sm:$0xff]
        %v1498 = vld [vmem:[%s1483 + $0xa8] sm:$0xff]
        %v1499 = vld [vmem:[%s1483 + $0xb0] sm:$0xff]
        %v1500 = vld [vmem:[%s1483 + $0xc0] sm:$0xff]
        %v1501 = vld [vmem:[%s1483 + $0xc8] sm:$0xff]
        %v1502 = vld [vmem:[%s1483 + $0xd8] sm:$0xff]
        %v1503 = vld [vmem:[%s1483 + $0xe0] sm:$0xff]
        %v1504 = vld [vmem:[%s1483 + $0xf0] sm:$0xff]
        %v1505 = vld [vmem:[%s1483 + $0xf8] sm:$0xff]
        %v1506 = vld [vmem:[%s1483 + $0x108] sm:$0xff]
        %v1507 = vld [vmem:[%s1483 + $0x110] sm:$0xff]
        %v1508 = vld [vmem:[%s1483 + $0x120] sm:$0xff]
        %v1509 = vld [vmem:[%s1483 + $0x128] sm:$0xff]
        %v1510 = vld [vmem:[%s1483 + $0x138] sm:$0xff]
        %v1511 = vld [vmem:[%s1483 + $0x140] sm:$0xff]
        %v1512 = vld [vmem:[%s1483 + $0x150] sm:$0xff]
        %v1513 = vld [vmem:[%s1483 + $0x158] sm:$0xff]
        %v1514 = vld [vmem:[%s1483 + $0x168] sm:$0xff]
        %v1515 = vld [vmem:[%s1483 + $0x170] sm:$0xff]
        %v1516 = vlaneseq
        %v1517 = vshrl.u32 %v1516, 7
        %v1518 = vsub.s32 0, %v1517
        %v1519 = vrot.slane %v1482, %v1518
        %v1520 = vmul.f32 %v1519, %v1484
        %v1521 = vmul.f32 %v1519, %v1485
        %v1522 = vmul.f32 %v1519, %v1486
        %v1523 = vmul.f32 %v1519, %v1487
        %v1524 = vmul.f32 %v1519, %v1488
        %v1525 = vmul.f32 %v1519, %v1489
        %v1526 = vmul.f32 %v1519, %v1490
        %v1527 = vmul.f32 %v1519, %v1491
        %v1528 = vmul.f32 %v1519, %v1492
        %v1529 = vmul.f32 %v1519, %v1493
        %v1530 = vmul.f32 %v1519, %v1494
        %v1531 = vmul.f32 %v1519, %v1495
        %v1532 = vmul.f32 %v1519, %v1496
        %v1533 = vmul.f32 %v1519, %v1497
        %v1534 = vmul.f32 %v1519, %v1498
        %v1535 = vmul.f32 %v1519, %v1499
        %v1536 = vmul.f32 %v1519, %v1500
        %v1537 = vmul.f32 %v1519, %v1501
        %v1538 = vmul.f32 %v1519, %v1502
        %v1539 = vmul.f32 %v1519, %v1503
        %v1540 = vmul.f32 %v1519, %v1504
        %v1541 = vmul.f32 %v1519, %v1505
        %v1542 = vmul.f32 %v1519, %v1506
        %v1543 = vmul.f32 %v1519, %v1507
        %v1544 = vmul.f32 %v1519, %v1508
        %v1545 = vmul.f32 %v1519, %v1509
        %v1546 = vmul.f32 %v1519, %v1510
        %v1547 = vmul.f32 %v1519, %v1511
        %v1548 = vmul.f32 %v1519, %v1512
        %v1549 = vmul.f32 %v1519, %v1513
        %v1550 = vmul.f32 %v1519, %v1514
        %v1551 = vmul.f32 %v1519, %v1515
        %v1552 = vadd.f32 %v1450, %v1520
        %v1553 = vadd.f32 %v1451, %v1521
        %v1554 = vadd.f32 %v1452, %v1522
        %v1555 = vadd.f32 %v1453, %v1523
        %v1556 = vadd.f32 %v1454, %v1524
        %v1557 = vadd.f32 %v1455, %v1525
        %v1558 = vadd.f32 %v1456, %v1526
        %v1559 = vadd.f32 %v1457, %v1527
        %v1560 = vadd.f32 %v1458, %v1528
        %v1561 = vadd.f32 %v1459, %v1529
        %v1562 = vadd.f32 %v1460, %v1530
        %v1563 = vadd.f32 %v1461, %v1531
        %v1564 = vadd.f32 %v1462, %v1532
        %v1565 = vadd.f32 %v1463, %v1533
        %v1566 = vadd.f32 %v1464, %v1534
        %v1567 = vadd.f32 %v1465, %v1535
        %v1568 = vadd.f32 %v1466, %v1536
        %v1569 = vadd.f32 %v1467, %v1537
        %v1570 = vadd.f32 %v1468, %v1538
        %v1571 = vadd.f32 %v1469, %v1539
        %v1572 = vadd.f32 %v1470, %v1540
        %v1573 = vadd.f32 %v1471, %v1541
        %v1574 = vadd.f32 %v1472, %v1542
        %v1575 = vadd.f32 %v1473, %v1543
        %v1576 = vadd.f32 %v1474, %v1544
        %v1577 = vadd.f32 %v1475, %v1545
        %v1578 = vadd.f32 %v1476, %v1546
        %v1579 = vadd.f32 %v1477, %v1547
        %v1580 = vadd.f32 %v1478, %v1548
        %v1581 = vadd.f32 %v1479, %v1549
        %v1582 = vadd.f32 %v1480, %v1550
        %v1583 = vadd.f32 %v1481, %v1551
        %v1584 = vld [vmem:[%s4 + $0x7] sm:$0x1]
        %v1585 = vld [vmem:[%s1483 + $0x1] sm:$0xff]
        %v1586 = vld [vmem:[%s1483 + $0x9] sm:$0xff]
        %v1587 = vld [vmem:[%s1483 + $0x19] sm:$0xff]
        %v1588 = vld [vmem:[%s1483 + $0x21] sm:$0xff]
        %v1589 = vld [vmem:[%s1483 + $0x31] sm:$0xff]
        %v1590 = vld [vmem:[%s1483 + $0x39] sm:$0xff]
        %v1591 = vld [vmem:[%s1483 + $0x49] sm:$0xff]
        %v1592 = vld [vmem:[%s1483 + $0x51] sm:$0xff]
        %v1593 = vld [vmem:[%s1483 + $0x61] sm:$0xff]
        %v1594 = vld [vmem:[%s1483 + $0x69] sm:$0xff]
        %v1595 = vld [vmem:[%s1483 + $0x79] sm:$0xff]
        %v1596 = vld [vmem:[%s1483 + $0x81] sm:$0xff]
        %v1597 = vld [vmem:[%s1483 + $0x91] sm:$0xff]
        %v1598 = vld [vmem:[%s1483 + $0x99] sm:$0xff]
        %v1599 = vld [vmem:[%s1483 + $0xa9] sm:$0xff]
        %v1600 = vld [vmem:[%s1483 + $0xb1] sm:$0xff]
        %v1601 = vld [vmem:[%s1483 + $0xc1] sm:$0xff]
        %v1602 = vld [vmem:[%s1483 + $0xc9] sm:$0xff]
        %v1603 = vld [vmem:[%s1483 + $0xd9] sm:$0xff]
        %v1604 = vld [vmem:[%s1483 + $0xe1] sm:$0xff]
        %v1605 = vld [vmem:[%s1483 + $0xf1] sm:$0xff]
        %v1606 = vld [vmem:[%s1483 + $0xf9] sm:$0xff]
        %v1607 = vld [vmem:[%s1483 + $0x109] sm:$0xff]
        %v1608 = vld [vmem:[%s1483 + $0x111] sm:$0xff]
        %v1609 = vld [vmem:[%s1483 + $0x121] sm:$0xff]
        %v1610 = vld [vmem:[%s1483 + $0x129] sm:$0xff]
        %v1611 = vld [vmem:[%s1483 + $0x139] sm:$0xff]
        %v1612 = vld [vmem:[%s1483 + $0x141] sm:$0xff]
        %v1613 = vld [vmem:[%s1483 + $0x151] sm:$0xff]
        %v1614 = vld [vmem:[%s1483 + $0x159] sm:$0xff]
        %v1615 = vld [vmem:[%s1483 + $0x169] sm:$0xff]
        %v1616 = vld [vmem:[%s1483 + $0x171] sm:$0xff]
        %v1617 = vlaneseq
        %v1618 = vshrl.u32 %v1617, 7
        %v1619 = vsub.s32 0, %v1618
        %v1620 = vrot.slane %v1584, %v1619
        %v1621 = vmul.f32 %v1620, %v1585
        %v1622 = vmul.f32 %v1620, %v1586
        %v1623 = vmul.f32 %v1620, %v1587
        %v1624 = vmul.f32 %v1620, %v1588
        %v1625 = vmul.f32 %v1620, %v1589
        %v1626 = vmul.f32 %v1620, %v1590
        %v1627 = vmul.f32 %v1620, %v1591
        %v1628 = vmul.f32 %v1620, %v1592
        %v1629 = vmul.f32 %v1620, %v1593
        %v1630 = vmul.f32 %v1620, %v1594
        %v1631 = vmul.f32 %v1620, %v1595
        %v1632 = vmul.f32 %v1620, %v1596
        %v1633 = vmul.f32 %v1620, %v1597
        %v1634 = vmul.f32 %v1620, %v1598
        %v1635 = vmul.f32 %v1620, %v1599
        %v1636 = vmul.f32 %v1620, %v1600
        %v1637 = vmul.f32 %v1620, %v1601
        %v1638 = vmul.f32 %v1620, %v1602
        %v1639 = vmul.f32 %v1620, %v1603
        %v1640 = vmul.f32 %v1620, %v1604
        %v1641 = vmul.f32 %v1620, %v1605
        %v1642 = vmul.f32 %v1620, %v1606
        %v1643 = vmul.f32 %v1620, %v1607
        %v1644 = vmul.f32 %v1620, %v1608
        %v1645 = vmul.f32 %v1620, %v1609
        %v1646 = vmul.f32 %v1620, %v1610
        %v1647 = vmul.f32 %v1620, %v1611
        %v1648 = vmul.f32 %v1620, %v1612
        %v1649 = vmul.f32 %v1620, %v1613
        %v1650 = vmul.f32 %v1620, %v1614
        %v1651 = vmul.f32 %v1620, %v1615
        %v1652 = vmul.f32 %v1620, %v1616
        %v1653 = vadd.f32 %v1552, %v1621
        %v1654 = vadd.f32 %v1553, %v1622
        %v1655 = vadd.f32 %v1554, %v1623
        %v1656 = vadd.f32 %v1555, %v1624
        %v1657 = vadd.f32 %v1556, %v1625
        %v1658 = vadd.f32 %v1557, %v1626
        %v1659 = vadd.f32 %v1558, %v1627
        %v1660 = vadd.f32 %v1559, %v1628
        %v1661 = vadd.f32 %v1560, %v1629
        %v1662 = vadd.f32 %v1561, %v1630
        %v1663 = vadd.f32 %v1562, %v1631
        %v1664 = vadd.f32 %v1563, %v1632
        %v1665 = vadd.f32 %v1564, %v1633
        %v1666 = vadd.f32 %v1565, %v1634
        %v1667 = vadd.f32 %v1566, %v1635
        %v1668 = vadd.f32 %v1567, %v1636
        %v1669 = vadd.f32 %v1568, %v1637
        %v1670 = vadd.f32 %v1569, %v1638
        %v1671 = vadd.f32 %v1570, %v1639
        %v1672 = vadd.f32 %v1571, %v1640
        %v1673 = vadd.f32 %v1572, %v1641
        %v1674 = vadd.f32 %v1573, %v1642
        %v1675 = vadd.f32 %v1574, %v1643
        %v1676 = vadd.f32 %v1575, %v1644
        %v1677 = vadd.f32 %v1576, %v1645
        %v1678 = vadd.f32 %v1577, %v1646
        %v1679 = vadd.f32 %v1578, %v1647
        %v1680 = vadd.f32 %v1579, %v1648
        %v1681 = vadd.f32 %v1580, %v1649
        %v1682 = vadd.f32 %v1581, %v1650
        %v1683 = vadd.f32 %v1582, %v1651
        %v1684 = vadd.f32 %v1583, %v1652
        %v1685 = vld [vmem:[%s4 + $0x8] sm:$0x1]
        %v1686 = vld [vmem:[%s1483 + $0x2] sm:$0xff]
        %v1687 = vld [vmem:[%s1483 + $0xa] sm:$0xff]
        %v1688 = vld [vmem:[%s1483 + $0x1a] sm:$0xff]
        %v1689 = vld [vmem:[%s1483 + $0x22] sm:$0xff]
        %v1690 = vld [vmem:[%s1483 + $0x32] sm:$0xff]
        %v1691 = vld [vmem:[%s1483 + $0x3a] sm:$0xff]
        %v1692 = vld [vmem:[%s1483 + $0x4a] sm:$0xff]
        %v1693 = vld [vmem:[%s1483 + $0x52] sm:$0xff]
        %v1694 = vld [vmem:[%s1483 + $0x62] sm:$0xff]
        %v1695 = vld [vmem:[%s1483 + $0x6a] sm:$0xff]
        %v1696 = vld [vmem:[%s1483 + $0x7a] sm:$0xff]
        %v1697 = vld [vmem:[%s1483 + $0x82] sm:$0xff]
        %v1698 = vld [vmem:[%s1483 + $0x92] sm:$0xff]
        %v1699 = vld [vmem:[%s1483 + $0x9a] sm:$0xff]
        %v1700 = vld [vmem:[%s1483 + $0xaa] sm:$0xff]
        %v1701 = vld [vmem:[%s1483 + $0xb2] sm:$0xff]
        %v1702 = vld [vmem:[%s1483 + $0xc2] sm:$0xff]
        %v1703 = vld [vmem:[%s1483 + $0xca] sm:$0xff]
        %v1704 = vld [vmem:[%s1483 + $0xda] sm:$0xff]
        %v1705 = vld [vmem:[%s1483 + $0xe2] sm:$0xff]
        %v1706 = vld [vmem:[%s1483 + $0xf2] sm:$0xff]
        %v1707 = vld [vmem:[%s1483 + $0xfa] sm:$0xff]
        %v1708 = vld [vmem:[%s1483 + $0x10a] sm:$0xff]
        %v1709 = vld [vmem:[%s1483 + $0x112] sm:$0xff]
        %v1710 = vld [vmem:[%s1483 + $0x122] sm:$0xff]
        %v1711 = vld [vmem:[%s1483 + $0x12a] sm:$0xff]
        %v1712 = vld [vmem:[%s1483 + $0x13a] sm:$0xff]
        %v1713 = vld [vmem:[%s1483 + $0x142] sm:$0xff]
        %v1714 = vld [vmem:[%s1483 + $0x152] sm:$0xff]
        %v1715 = vld [vmem:[%s1483 + $0x15a] sm:$0xff]
        %v1716 = vld [vmem:[%s1483 + $0x16a] sm:$0xff]
        %v1717 = vld [vmem:[%s1483 + $0x172] sm:$0xff]
        %v1718 = vlaneseq
        %v1719 = vshrl.u32 %v1718, 7
        %v1720 = vsub.s32 0, %v1719
        %v1721 = vrot.slane %v1685, %v1720
        %v1722 = vmul.f32 %v1721, %v1686
        %v1723 = vmul.f32 %v1721, %v1687
        %v1724 = vmul.f32 %v1721, %v1688
        %v1725 = vmul.f32 %v1721, %v1689
        %v1726 = vmul.f32 %v1721, %v1690
        %v1727 = vmul.f32 %v1721, %v1691
        %v1728 = vmul.f32 %v1721, %v1692
        %v1729 = vmul.f32 %v1721, %v1693
        %v1730 = vmul.f32 %v1721, %v1694
        %v1731 = vmul.f32 %v1721, %v1695
        %v1732 = vmul.f32 %v1721, %v1696
        %v1733 = vmul.f32 %v1721, %v1697
        %v1734 = vmul.f32 %v1721, %v1698
        %v1735 = vmul.f32 %v1721, %v1699
        %v1736 = vmul.f32 %v1721, %v1700
        %v1737 = vmul.f32 %v1721, %v1701
        %v1738 = vmul.f32 %v1721, %v1702
        %v1739 = vmul.f32 %v1721, %v1703
        %v1740 = vmul.f32 %v1721, %v1704
        %v1741 = vmul.f32 %v1721, %v1705
        %v1742 = vmul.f32 %v1721, %v1706
        %v1743 = vmul.f32 %v1721, %v1707
        %v1744 = vmul.f32 %v1721, %v1708
        %v1745 = vmul.f32 %v1721, %v1709
        %v1746 = vmul.f32 %v1721, %v1710
        %v1747 = vmul.f32 %v1721, %v1711
        %v1748 = vmul.f32 %v1721, %v1712
        %v1749 = vmul.f32 %v1721, %v1713
        %v1750 = vmul.f32 %v1721, %v1714
        %v1751 = vmul.f32 %v1721, %v1715
        %v1752 = vmul.f32 %v1721, %v1716
        %v1753 = vmul.f32 %v1721, %v1717
        %v1754 = vadd.f32 %v1653, %v1722
        %v1755 = vadd.f32 %v1654, %v1723
        %v1756 = vadd.f32 %v1655, %v1724
        %v1757 = vadd.f32 %v1656, %v1725
        %v1758 = vadd.f32 %v1657, %v1726
        %v1759 = vadd.f32 %v1658, %v1727
        %v1760 = vadd.f32 %v1659, %v1728
        %v1761 = vadd.f32 %v1660, %v1729
        %v1762 = vadd.f32 %v1661, %v1730
        %v1763 = vadd.f32 %v1662, %v1731
        %v1764 = vadd.f32 %v1663, %v1732
        %v1765 = vadd.f32 %v1664, %v1733
        %v1766 = vadd.f32 %v1665, %v1734
        %v1767 = vadd.f32 %v1666, %v1735
        %v1768 = vadd.f32 %v1667, %v1736
        %v1769 = vadd.f32 %v1668, %v1737
        %v1770 = vadd.f32 %v1669, %v1738
        %v1771 = vadd.f32 %v1670, %v1739
        %v1772 = vadd.f32 %v1671, %v1740
        %v1773 = vadd.f32 %v1672, %v1741
        %v1774 = vadd.f32 %v1673, %v1742
        %v1775 = vadd.f32 %v1674, %v1743
        %v1776 = vadd.f32 %v1675, %v1744
        %v1777 = vadd.f32 %v1676, %v1745
        %v1778 = vadd.f32 %v1677, %v1746
        %v1779 = vadd.f32 %v1678, %v1747
        %v1780 = vadd.f32 %v1679, %v1748
        %v1781 = vadd.f32 %v1680, %v1749
        %v1782 = vadd.f32 %v1681, %v1750
        %v1783 = vadd.f32 %v1682, %v1751
        %v1784 = vadd.f32 %v1683, %v1752
        %v1785 = vadd.f32 %v1684, %v1753
        %v1786 = vld [vmem:[%s5] sm:$0x1]
        %v1788 = vlaneseq
        %v1789 = vshrl.u32 %v1788, 7
        %v1790 = vsub.s32 0, %v1789
        %v1791 = vrot.slane %v1786, %v1790
        %v1793 = vmul.f32 %v1754, %v1791
        %v1794 = vmul.f32 %v1755, %v1791
        %v1795 = vmul.f32 %v1756, %v1791
        %v1796 = vmul.f32 %v1757, %v1791
        %v1797 = vmul.f32 %v1758, %v1791
        %v1798 = vmul.f32 %v1759, %v1791
        %v1799 = vmul.f32 %v1760, %v1791
        %v1800 = vmul.f32 %v1761, %v1791
        %v1801 = vmul.f32 %v1762, %v1791
        %v1802 = vmul.f32 %v1763, %v1791
        %v1803 = vmul.f32 %v1764, %v1791
        %v1804 = vmul.f32 %v1765, %v1791
        %v1805 = vmul.f32 %v1766, %v1791
        %v1806 = vmul.f32 %v1767, %v1791
        %v1807 = vmul.f32 %v1768, %v1791
        %v1808 = vmul.f32 %v1769, %v1791
        %v1809 = vmul.f32 %v1770, %v1791
        %v1810 = vmul.f32 %v1771, %v1791
        %v1811 = vmul.f32 %v1772, %v1791
        %v1812 = vmul.f32 %v1773, %v1791
        %v1813 = vmul.f32 %v1774, %v1791
        %v1814 = vmul.f32 %v1775, %v1791
        %v1815 = vmul.f32 %v1776, %v1791
        %v1816 = vmul.f32 %v1777, %v1791
        %v1817 = vmul.f32 %v1778, %v1791
        %v1818 = vmul.f32 %v1779, %v1791
        %v1819 = vmul.f32 %v1780, %v1791
        %v1820 = vmul.f32 %v1781, %v1791
        %v1821 = vmul.f32 %v1782, %v1791
        %v1822 = vmul.f32 %v1783, %v1791
        %v1823 = vmul.f32 %v1784, %v1791
        %v1824 = vmul.f32 %v1785, %v1791
        %v1825 = vld [vmem:[%s6] sm:$0x1]
        %v1827 = vlaneseq
        %v1828 = vshrl.u32 %v1827, 7
        %v1829 = vsub.s32 0, %v1828
        %v1830 = vrot.slane %v1825, %v1829
        %v1832 = vadd.f32 %v1793, %v1830
        %v1833 = vadd.f32 %v1794, %v1830
        %v1834 = vadd.f32 %v1795, %v1830
        %v1835 = vadd.f32 %v1796, %v1830
        %v1836 = vadd.f32 %v1797, %v1830
        %v1837 = vadd.f32 %v1798, %v1830
        %v1838 = vadd.f32 %v1799, %v1830
        %v1839 = vadd.f32 %v1800, %v1830
        %v1840 = vadd.f32 %v1801, %v1830
        %v1841 = vadd.f32 %v1802, %v1830
        %v1842 = vadd.f32 %v1803, %v1830
        %v1843 = vadd.f32 %v1804, %v1830
        %v1844 = vadd.f32 %v1805, %v1830
        %v1845 = vadd.f32 %v1806, %v1830
        %v1846 = vadd.f32 %v1807, %v1830
        %v1847 = vadd.f32 %v1808, %v1830
        %v1848 = vadd.f32 %v1809, %v1830
        %v1849 = vadd.f32 %v1810, %v1830
        %v1850 = vadd.f32 %v1811, %v1830
        %v1851 = vadd.f32 %v1812, %v1830
        %v1852 = vadd.f32 %v1813, %v1830
        %v1853 = vadd.f32 %v1814, %v1830
        %v1854 = vadd.f32 %v1815, %v1830
        %v1855 = vadd.f32 %v1816, %v1830
        %v1856 = vadd.f32 %v1817, %v1830
        %v1857 = vadd.f32 %v1818, %v1830
        %v1858 = vadd.f32 %v1819, %v1830
        %v1859 = vadd.f32 %v1820, %v1830
        %v1860 = vadd.f32 %v1821, %v1830
        %v1861 = vadd.f32 %v1822, %v1830
        %v1862 = vadd.f32 %v1823, %v1830
        %v1863 = vadd.f32 %v1824, %v1830
        %v1864 = vmax.f32 %v1832, 0.0
        %v1865 = vmax.f32 %v1833, 0.0
        %v1866 = vmax.f32 %v1834, 0.0
        %v1867 = vmax.f32 %v1835, 0.0
        %v1868 = vmax.f32 %v1836, 0.0
        %v1869 = vmax.f32 %v1837, 0.0
        %v1870 = vmax.f32 %v1838, 0.0
        %v1871 = vmax.f32 %v1839, 0.0
        %v1872 = vmax.f32 %v1840, 0.0
        %v1873 = vmax.f32 %v1841, 0.0
        %v1874 = vmax.f32 %v1842, 0.0
        %v1875 = vmax.f32 %v1843, 0.0
        %v1876 = vmax.f32 %v1844, 0.0
        %v1877 = vmax.f32 %v1845, 0.0
        %v1878 = vmax.f32 %v1846, 0.0
        %v1879 = vmax.f32 %v1847, 0.0
        %v1880 = vmax.f32 %v1848, 0.0
        %v1881 = vmax.f32 %v1849, 0.0
        %v1882 = vmax.f32 %v1850, 0.0
        %v1883 = vmax.f32 %v1851, 0.0
        %v1884 = vmax.f32 %v1852, 0.0
        %v1885 = vmax.f32 %v1853, 0.0
        %v1886 = vmax.f32 %v1854, 0.0
        %v1887 = vmax.f32 %v1855, 0.0
        %v1888 = vmax.f32 %v1856, 0.0
        %v1889 = vmax.f32 %v1857, 0.0
        %v1890 = vmax.f32 %v1858, 0.0
        %v1891 = vmax.f32 %v1859, 0.0
        %v1892 = vmax.f32 %v1860, 0.0
        %v1893 = vmax.f32 %v1861, 0.0
        %v1894 = vmax.f32 %v1862, 0.0
        %v1895 = vmax.f32 %v1863, 0.0
        %v1896 = vmin.f32 %v1864, 6.0
        %v1897 = vmin.f32 %v1865, 6.0
        %v1898 = vmin.f32 %v1866, 6.0
        %v1899 = vmin.f32 %v1867, 6.0
        %v1900 = vmin.f32 %v1868, 6.0
        %v1901 = vmin.f32 %v1869, 6.0
        %v1902 = vmin.f32 %v1870, 6.0
        %v1903 = vmin.f32 %v1871, 6.0
        %v1904 = vmin.f32 %v1872, 6.0
        %v1905 = vmin.f32 %v1873, 6.0
        %v1906 = vmin.f32 %v1874, 6.0
        %v1907 = vmin.f32 %v1875, 6.0
        %v1908 = vmin.f32 %v1876, 6.0
        %v1909 = vmin.f32 %v1877, 6.0
        %v1910 = vmin.f32 %v1878, 6.0
        %v1911 = vmin.f32 %v1879, 6.0
        %v1912 = vmin.f32 %v1880, 6.0
        %v1913 = vmin.f32 %v1881, 6.0
        %v1914 = vmin.f32 %v1882, 6.0
        %v1915 = vmin.f32 %v1883, 6.0
        %v1916 = vmin.f32 %v1884, 6.0
        %v1917 = vmin.f32 %v1885, 6.0
        %v1918 = vmin.f32 %v1886, 6.0
        %v1919 = vmin.f32 %v1887, 6.0
        %v1920 = vmin.f32 %v1888, 6.0
        %v1921 = vmin.f32 %v1889, 6.0
        %v1922 = vmin.f32 %v1890, 6.0
        %v1923 = vmin.f32 %v1891, 6.0
        %v1924 = vmin.f32 %v1892, 6.0
        %v1925 = vmin.f32 %v1893, 6.0
        %v1926 = vmin.f32 %v1894, 6.0
        %v1927 = vmin.f32 %v1895, 6.0
        %v1928 = vpack.c.bf16 %v1897, %v1896
        %v1929 = vpack.c.bf16 %v1899, %v1898
        %v1930 = vpack.c.bf16 %v1901, %v1900
        %v1931 = vpack.c.bf16 %v1903, %v1902
        %v1932 = vpack.c.bf16 %v1905, %v1904
        %v1933 = vpack.c.bf16 %v1907, %v1906
        %v1934 = vpack.c.bf16 %v1909, %v1908
        %v1935 = vpack.c.bf16 %v1911, %v1910
        %v1936 = vpack.c.bf16 %v1913, %v1912
        %v1937 = vpack.c.bf16 %v1915, %v1914
        %v1938 = vpack.c.bf16 %v1917, %v1916
        %v1939 = vpack.c.bf16 %v1919, %v1918
        %v1940 = vpack.c.bf16 %v1921, %v1920
        %v1941 = vpack.c.bf16 %v1923, %v1922
        %v1942 = vpack.c.bf16 %v1925, %v1924
        %v1943 = vpack.c.bf16 %v1927, %v1926
        %v1944 = vld [vmem:[%s7] sm:$0xf]
        %v1945 = vld [vmem:[%s7 + $0x4] sm:$0xf]
        %v1946 = vld [vmem:[%s7 + $0x8] sm:$0xf]
        %v1947 = vld [vmem:[%s7 + $0xc] sm:$0xf]
        %v1948 = vld [vmem:[%s7 + $0x10] sm:$0xf]
        %v1949 = vld [vmem:[%s7 + $0x14] sm:$0xf]
        %v1950 = vld [vmem:[%s7 + $0x18] sm:$0xf]
        %v1951 = vld [vmem:[%s7 + $0x1c] sm:$0xf]
        %v1952 = vld [vmem:[%s7 + $0x20] sm:$0xf]
        %v1953 = vld [vmem:[%s7 + $0x24] sm:$0xf]
        %v1954 = vld [vmem:[%s7 + $0x28] sm:$0xf]
        %v1955 = vld [vmem:[%s7 + $0x2c] sm:$0xf]
        %v1968 = vunpack.c.l.b16 %v1944
        %v1969 = vunpack.c.l.b16 %v1945
        %v1970 = vunpack.c.l.b16 %v1946
        %v1971 = vunpack.c.l.b16 %v1947
        %v1972 = vunpack.c.l.b16 %v1948
        %v1973 = vunpack.c.l.b16 %v1949
        %v1974 = vunpack.c.l.b16 %v1950
        %v1975 = vunpack.c.l.b16 %v1951
        %v1976 = vunpack.c.l.b16 %v1952
        %v1977 = vunpack.c.l.b16 %v1953
        %v1978 = vunpack.c.l.b16 %v1954
        %v1979 = vunpack.c.l.b16 %v1955
        %v1980 = vpack.c.b16 %v1969, %v1968
        %v1981 = vpack.c.b16 %v1971, %v1970
        %v1982 = vpack.c.b16 %v1973, %v1972
        %v1983 = vpack.c.b16 %v1975, %v1974
        %v1984 = vpack.c.b16 %v1977, %v1976
        %v1985 = vpack.c.b16 %v1979, %v1978
        %v1993 = vsel %vm787, %v1928, 0
        %v1996 = vsel %vm787, %v1929, 0
        %v1999 = vsel %vm787, %v1930, 0
        %v2002 = vsel %vm787, %v1931, 0
        %v2005 = vsel %vm787, %v1932, 0
        %v2008 = vsel %vm787, %v1933, 0
        %v2011 = vsel %vm787, %v1934, 0
        %v2014 = vsel %vm787, %v1935, 0
        %v2017 = vsel %vm787, %v1936, 0
        %v2020 = vsel %vm787, %v1937, 0
        %v2023 = vsel %vm787, %v1938, 0
        %v2026 = vsel %vm787, %v1939, 0
        %v2029 = vsel %vm787, %v1940, 0
        %v2032 = vsel %vm787, %v1941, 0
        %v2035 = vsel %vm787, %v1942, 0
        %v2038 = vsel %vm787, %v1943, 0
        %2040 = vmatprep.subr.bf16.mxu0 0
        %2041 = vmatpush1.bf16.msra.mxu0 0
        %2042 = vmatprep.subr.bf16.mxu0 0
        %2043 = vmatpush1.bf16.msra.mxu0 0
        %2044 = vmatprep.subr.bf16.mxu0 0
        %2045 = vmatpush1.bf16.msra.mxu0 %v1985
        %2046 = vmatprep.subr.bf16.mxu0 0
        %2047 = vmatpush1.bf16.msra.mxu0 %v1984
        %2048 = vmatprep.subr.bf16.mxu0 0
        %2049 = vmatpush1.bf16.msra.mxu0 %v1983
        %2050 = vmatprep.subr.bf16.mxu0 0
        %2051 = vmatpush1.bf16.msra.mxu0 %v1982
        %2052 = vmatprep.subr.bf16.mxu0 0
        %2053 = vmatpush1.bf16.msra.mxu0 %v1981
        %2054 = vmatprep.subr.bf16.mxu0 0
        %2055 = vmatpush1.bf16.msra.mxu0 %v1980
        %2056 = vmatprep.subr.bf16.mxu0 0
        %2057 = vmatpush2.bf16.msra.mxu0 0
        %2058 = vmatprep.subr.bf16.mxu0 0
        %2059 = vmatpush2.bf16.msra.mxu0 0
        %2060 = vmatprep.subr.bf16.mxu0 0
        %2061 = vmatpush2.bf16.msra.mxu0 0
        %2062 = vmatprep.subr.bf16.mxu0 0
        %2063 = vmatpush2.bf16.msra.mxu0 0
        %2064 = vmatprep.subr.bf16.mxu0 0
        %2065 = vmatpush2.bf16.msra.mxu0 0
        %2066 = vmatprep.subr.bf16.mxu0 0
        %2067 = vmatpush2.bf16.msra.mxu0 0
        %2068 = vmatprep.subr.bf16.mxu0 0
        %2069 = vmatpush2.bf16.msra.mxu0 0
        %2070 = vmatprep.subr.bf16.mxu0 0
        %2071 = vmatpush2.bf16.msra.mxu0 0
        %2072 = vmatprep.mubr.bf16.mxu0 0
        %2073 = vmatmul.mubr.bf16.gmra.mxu0 %v1993
        %v2074 = vpop.f32.mrf.mxu0
        %v2075 = vadd.f32 0.0, %v2074
        %v2076 = vpop.f32.mrf.mxu0
        %v2077 = vpop.f32.mrf.mxu0
        %v2078 = vadd.f32 0.0, %v2077
        %v2079 = vpop.f32.mrf.mxu0
        %2080 = vmatprep.mubr.bf16.mxu0 0
        %2081 = vmatmul.mubr.bf16.gmra.mxu0 %v1996
        %v2082 = vpop.f32.mrf.mxu0
        %v2083 = vadd.f32 0.0, %v2082
        %v2084 = vpop.f32.mrf.mxu0
        %v2085 = vpop.f32.mrf.mxu0
        %v2086 = vadd.f32 0.0, %v2085
        %v2087 = vpop.f32.mrf.mxu0
        %2088 = vmatprep.mubr.bf16.mxu0 0
        %2089 = vmatmul.mubr.bf16.gmra.mxu0 %v1999
        %v2090 = vpop.f32.mrf.mxu0
        %v2091 = vadd.f32 0.0, %v2090
        %v2092 = vpop.f32.mrf.mxu0
        %v2093 = vpop.f32.mrf.mxu0
        %v2094 = vadd.f32 0.0, %v2093
        %v2095 = vpop.f32.mrf.mxu0
        %2096 = vmatprep.mubr.bf16.mxu0 0
        %2097 = vmatmul.mubr.bf16.gmra.mxu0 %v2002
        %v2098 = vpop.f32.mrf.mxu0
        %v2099 = vadd.f32 0.0, %v2098
        %v2100 = vpop.f32.mrf.mxu0
        %v2101 = vpop.f32.mrf.mxu0
        %v2102 = vadd.f32 0.0, %v2101
        %v2103 = vpop.f32.mrf.mxu0
        %2104 = vmatprep.mubr.bf16.mxu0 0
        %2105 = vmatmul.mubr.bf16.gmra.mxu0 %v2005
        %v2106 = vpop.f32.mrf.mxu0
        %v2107 = vadd.f32 0.0, %v2106
        %v2108 = vpop.f32.mrf.mxu0
        %v2109 = vpop.f32.mrf.mxu0
        %v2110 = vadd.f32 0.0, %v2109
        %v2111 = vpop.f32.mrf.mxu0
        %2112 = vmatprep.mubr.bf16.mxu0 0
        %2113 = vmatmul.mubr.bf16.gmra.mxu0 %v2008
        %v2114 = vpop.f32.mrf.mxu0
        %v2115 = vadd.f32 0.0, %v2114
        %v2116 = vpop.f32.mrf.mxu0
        %v2117 = vpop.f32.mrf.mxu0
        %v2118 = vadd.f32 0.0, %v2117
        %v2119 = vpop.f32.mrf.mxu0
        %2120 = vmatprep.mubr.bf16.mxu0 0
        %2121 = vmatmul.mubr.bf16.gmra.mxu0 %v2011
        %v2122 = vpop.f32.mrf.mxu0
        %v2123 = vadd.f32 0.0, %v2122
        %v2124 = vpop.f32.mrf.mxu0
        %v2125 = vpop.f32.mrf.mxu0
        %v2126 = vadd.f32 0.0, %v2125
        %v2127 = vpop.f32.mrf.mxu0
        %2128 = vmatprep.mubr.bf16.mxu0 0
        %2129 = vmatmul.mubr.bf16.gmra.mxu0 %v2014
        %v2130 = vpop.f32.mrf.mxu0
        %v2131 = vadd.f32 0.0, %v2130
        %v2132 = vpop.f32.mrf.mxu0
        %v2133 = vpop.f32.mrf.mxu0
        %v2134 = vadd.f32 0.0, %v2133
        %v2135 = vpop.f32.mrf.mxu0
        %2136 = vmatprep.mubr.bf16.mxu0 0
        %2137 = vmatmul.mubr.bf16.gmra.mxu0 %v2017
        %v2138 = vpop.f32.mrf.mxu0
        %v2139 = vadd.f32 0.0, %v2138
        %v2140 = vpop.f32.mrf.mxu0
        %v2141 = vpop.f32.mrf.mxu0
        %v2142 = vadd.f32 0.0, %v2141
        %v2143 = vpop.f32.mrf.mxu0
        %2144 = vmatprep.mubr.bf16.mxu0 0
        %2145 = vmatmul.mubr.bf16.gmra.mxu0 %v2020
        %v2146 = vpop.f32.mrf.mxu0
        %v2147 = vadd.f32 0.0, %v2146
        %v2148 = vpop.f32.mrf.mxu0
        %v2149 = vpop.f32.mrf.mxu0
        %v2150 = vadd.f32 0.0, %v2149
        %v2151 = vpop.f32.mrf.mxu0
        %2152 = vmatprep.mubr.bf16.mxu0 0
        %2153 = vmatmul.mubr.bf16.gmra.mxu0 %v2023
        %v2154 = vpop.f32.mrf.mxu0
        %v2155 = vadd.f32 0.0, %v2154
        %v2156 = vpop.f32.mrf.mxu0
        %v2157 = vpop.f32.mrf.mxu0
        %v2158 = vadd.f32 0.0, %v2157
        %v2159 = vpop.f32.mrf.mxu0
        %2160 = vmatprep.mubr.bf16.mxu0 0
        %2161 = vmatmul.mubr.bf16.gmra.mxu0 %v2026
        %v2162 = vpop.f32.mrf.mxu0
        %v2163 = vadd.f32 0.0, %v2162
        %v2164 = vpop.f32.mrf.mxu0
        %v2165 = vpop.f32.mrf.mxu0
        %v2166 = vadd.f32 0.0, %v2165
        %v2167 = vpop.f32.mrf.mxu0
        %2168 = vmatprep.mubr.bf16.mxu0 0
        %2169 = vmatmul.mubr.bf16.gmra.mxu0 %v2029
        %v2170 = vpop.f32.mrf.mxu0
        %v2171 = vadd.f32 0.0, %v2170
        %v2172 = vpop.f32.mrf.mxu0
        %v2173 = vpop.f32.mrf.mxu0
        %v2174 = vadd.f32 0.0, %v2173
        %v2175 = vpop.f32.mrf.mxu0
        %2176 = vmatprep.mubr.bf16.mxu0 0
        %2177 = vmatmul.mubr.bf16.gmra.mxu0 %v2032
        %v2178 = vpop.f32.mrf.mxu0
        %v2179 = vadd.f32 0.0, %v2178
        %v2180 = vpop.f32.mrf.mxu0
        %v2181 = vpop.f32.mrf.mxu0
        %v2182 = vadd.f32 0.0, %v2181
        %v2183 = vpop.f32.mrf.mxu0
        %2184 = vmatprep.mubr.bf16.mxu0 0
        %2185 = vmatmul.mubr.bf16.gmra.mxu0 %v2035
        %v2186 = vpop.f32.mrf.mxu0
        %v2187 = vadd.f32 0.0, %v2186
        %v2188 = vpop.f32.mrf.mxu0
        %v2189 = vpop.f32.mrf.mxu0
        %v2190 = vadd.f32 0.0, %v2189
        %v2191 = vpop.f32.mrf.mxu0
        %2192 = vmatprep.mubr.bf16.mxu0 0
        %2193 = vmatmul.mubr.bf16.gmra.mxu0 %v2038
        %v2194 = vpop.f32.mrf.mxu0
        %v2195 = vadd.f32 0.0, %v2194
        %v2196 = vpop.f32.mrf.mxu0
        %v2197 = vpop.f32.mrf.mxu0
        %v2198 = vadd.f32 0.0, %v2197
        %v2199 = vpop.f32.mrf.mxu0
        %2200 = vdwg.mxu0
        %v2201 = vld [vmem:[%s8] sm:$0x1]
        %v2203 = vlaneseq
        %v2204 = vshrl.u32 %v2203, 7
        %v2205 = vsub.s32 0, %v2204
        %v2206 = vrot.slane %v2201, %v2205
        %v2208 = vmul.f32 %v2075, %v2206
        %v2209 = vmul.f32 %v2078, %v2206
        %v2210 = vmul.f32 %v2083, %v2206
        %v2211 = vmul.f32 %v2086, %v2206
        %v2212 = vmul.f32 %v2091, %v2206
        %v2213 = vmul.f32 %v2094, %v2206
        %v2214 = vmul.f32 %v2099, %v2206
        %v2215 = vmul.f32 %v2102, %v2206
        %v2216 = vmul.f32 %v2107, %v2206
        %v2217 = vmul.f32 %v2110, %v2206
        %v2218 = vmul.f32 %v2115, %v2206
        %v2219 = vmul.f32 %v2118, %v2206
        %v2220 = vmul.f32 %v2123, %v2206
        %v2221 = vmul.f32 %v2126, %v2206
        %v2222 = vmul.f32 %v2131, %v2206
        %v2223 = vmul.f32 %v2134, %v2206
        %v2224 = vmul.f32 %v2139, %v2206
        %v2225 = vmul.f32 %v2142, %v2206
        %v2226 = vmul.f32 %v2147, %v2206
        %v2227 = vmul.f32 %v2150, %v2206
        %v2228 = vmul.f32 %v2155, %v2206
        %v2229 = vmul.f32 %v2158, %v2206
        %v2230 = vmul.f32 %v2163, %v2206
        %v2231 = vmul.f32 %v2166, %v2206
        %v2232 = vmul.f32 %v2171, %v2206
        %v2233 = vmul.f32 %v2174, %v2206
        %v2234 = vmul.f32 %v2179, %v2206
        %v2235 = vmul.f32 %v2182, %v2206
        %v2236 = vmul.f32 %v2187, %v2206
        %v2237 = vmul.f32 %v2190, %v2206
        %v2238 = vmul.f32 %v2195, %v2206
        %v2239 = vmul.f32 %v2198, %v2206
        %v2240 = vld [vmem:[%s9] sm:$0x1]
        %v2242 = vlaneseq
        %v2243 = vshrl.u32 %v2242, 7
        %v2244 = vsub.s32 0, %v2243
        %v2245 = vrot.slane %v2240, %v2244
        %v2247 = vadd.f32 %v2208, %v2245
        %v2248 = vadd.f32 %v2209, %v2245
        %v2249 = vadd.f32 %v2210, %v2245
        %v2250 = vadd.f32 %v2211, %v2245
        %v2251 = vadd.f32 %v2212, %v2245
        %v2252 = vadd.f32 %v2213, %v2245
        %v2253 = vadd.f32 %v2214, %v2245
        %v2254 = vadd.f32 %v2215, %v2245
        %v2255 = vadd.f32 %v2216, %v2245
        %v2256 = vadd.f32 %v2217, %v2245
        %v2257 = vadd.f32 %v2218, %v2245
        %v2258 = vadd.f32 %v2219, %v2245
        %v2259 = vadd.f32 %v2220, %v2245
        %v2260 = vadd.f32 %v2221, %v2245
        %v2261 = vadd.f32 %v2222, %v2245
        %v2262 = vadd.f32 %v2223, %v2245
        %v2263 = vadd.f32 %v2224, %v2245
        %v2264 = vadd.f32 %v2225, %v2245
        %v2265 = vadd.f32 %v2226, %v2245
        %v2266 = vadd.f32 %v2227, %v2245
        %v2267 = vadd.f32 %v2228, %v2245
        %v2268 = vadd.f32 %v2229, %v2245
        %v2269 = vadd.f32 %v2230, %v2245
        %v2270 = vadd.f32 %v2231, %v2245
        %v2271 = vadd.f32 %v2232, %v2245
        %v2272 = vadd.f32 %v2233, %v2245
        %v2273 = vadd.f32 %v2234, %v2245
        %v2274 = vadd.f32 %v2235, %v2245
        %v2275 = vadd.f32 %v2236, %v2245
        %v2276 = vadd.f32 %v2237, %v2245
        %v2277 = vadd.f32 %v2238, %v2245
        %v2278 = vadd.f32 %v2239, %v2245
        %v2279 = vadd.f32 %v2247, %v379
        %v2280 = vadd.f32 %v2248, %v380
        %v2281 = vadd.f32 %v2249, %v381
        %v2282 = vadd.f32 %v2250, %v382
        %v2283 = vadd.f32 %v2251, %v383
        %v2284 = vadd.f32 %v2252, %v384
        %v2285 = vadd.f32 %v2253, %v385
        %v2286 = vadd.f32 %v2254, %v386
        %v2287 = vadd.f32 %v2255, %v387
        %v2288 = vadd.f32 %v2256, %v388
        %v2289 = vadd.f32 %v2257, %v389
        %v2290 = vadd.f32 %v2258, %v390
        %v2291 = vadd.f32 %v2259, %v391
        %v2292 = vadd.f32 %v2260, %v392
        %v2293 = vadd.f32 %v2261, %v393
        %v2294 = vadd.f32 %v2262, %v394
        %v2295 = vadd.f32 %v2263, %v395
        %v2296 = vadd.f32 %v2264, %v396
        %v2297 = vadd.f32 %v2265, %v397
        %v2298 = vadd.f32 %v2266, %v398
        %v2299 = vadd.f32 %v2267, %v399
        %v2300 = vadd.f32 %v2268, %v400
        %v2301 = vadd.f32 %v2269, %v401
        %v2302 = vadd.f32 %v2270, %v402
        %v2303 = vadd.f32 %v2271, %v403
        %v2304 = vadd.f32 %v2272, %v404
        %v2305 = vadd.f32 %v2273, %v405
        %v2306 = vadd.f32 %v2274, %v406
        %v2307 = vadd.f32 %v2275, %v407
        %v2308 = vadd.f32 %v2276, %v408
        %v2309 = vadd.f32 %v2277, %v409
        %v2310 = vadd.f32 %v2278, %v410
        %2311 = vst.msk [vmem:[%s377] sm:$0xff] %vm435, %v2279
        %2312 = vst.msk [vmem:[%s377 + $0x8] sm:$0xff] %vm435, %v2280
        %2313 = vst.msk [vmem:[%s377 + $0x10] sm:$0xff] %vm435, %v2281
        %2314 = vst.msk [vmem:[%s377 + $0x18] sm:$0xff] %vm435, %v2282
        %2315 = vst.msk [vmem:[%s377 + $0x20] sm:$0xff] %vm435, %v2283
        %2316 = vst.msk [vmem:[%s377 + $0x28] sm:$0xff] %vm435, %v2284
        %2317 = vst.msk [vmem:[%s377 + $0x30] sm:$0xff] %vm435, %v2285
        %2318 = vst.msk [vmem:[%s377 + $0x38] sm:$0xff] %vm435, %v2286
        %2319 = vst.msk [vmem:[%s377 + $0x40] sm:$0xff] %vm435, %v2287
        %2320 = vst.msk [vmem:[%s377 + $0x48] sm:$0xff] %vm435, %v2288
        %2321 = vst.msk [vmem:[%s377 + $0x50] sm:$0xff] %vm435, %v2289
        %2322 = vst.msk [vmem:[%s377 + $0x58] sm:$0xff] %vm435, %v2290
        %2323 = vst.msk [vmem:[%s377 + $0x60] sm:$0xff] %vm435, %v2291
        %2324 = vst.msk [vmem:[%s377 + $0x68] sm:$0xff] %vm435, %v2292
        %2325 = vst.msk [vmem:[%s377 + $0x70] sm:$0xff] %vm435, %v2293
        %2326 = vst.msk [vmem:[%s377 + $0x78] sm:$0xff] %vm435, %v2294
        %2327 = vst.msk [vmem:[%s377 + $0x80] sm:$0xff] %vm435, %v2295
        %2328 = vst.msk [vmem:[%s377 + $0x88] sm:$0xff] %vm435, %v2296
        %2329 = vst.msk [vmem:[%s377 + $0x90] sm:$0xff] %vm435, %v2297
        %2330 = vst.msk [vmem:[%s377 + $0x98] sm:$0xff] %vm435, %v2298
        %2331 = vst.msk [vmem:[%s377 + $0xa0] sm:$0xff] %vm435, %v2299
        %2332 = vst.msk [vmem:[%s377 + $0xa8] sm:$0xff] %vm435, %v2300
        %2333 = vst.msk [vmem:[%s377 + $0xb0] sm:$0xff] %vm435, %v2301
        %2334 = vst.msk [vmem:[%s377 + $0xb8] sm:$0xff] %vm435, %v2302
        %2335 = vst.msk [vmem:[%s377 + $0xc0] sm:$0xff] %vm435, %v2303
        %2336 = vst.msk [vmem:[%s377 + $0xc8] sm:$0xff] %vm435, %v2304
        %2337 = vst.msk [vmem:[%s377 + $0xd0] sm:$0xff] %vm435, %v2305
        %2338 = vst.msk [vmem:[%s377 + $0xd8] sm:$0xff] %vm435, %v2306
        %2339 = vst.msk [vmem:[%s377 + $0xe0] sm:$0xff] %vm435, %v2307
        %2340 = vst.msk [vmem:[%s377 + $0xe8] sm:$0xff] %vm435, %v2308
        %2341 = vst.msk [vmem:[%s377 + $0xf0] sm:$0xff] %vm435, %v2309
        %2342 = vst.msk [vmem:[%s377 + $0xf8] sm:$0xff] %vm435, %v2310
        %s2343 = sand.u32 %s250, 1
        %s2344 = scalar_lea.sflag [#allocation5], %s2343
        %s2345 = sand.u32 %s250, 1
        %s2346 = smul.addr %s2345, 256
        %s2347 = scalar_lea.vmem [#allocation6], %s2346
        // Predicated region
        $region65: #{tpu_custom_call.1} parent=59 // pred_check
          %p2348 = pneg %p260
        $region66: #{tpu_custom_call.1} parent=59 // pred_check_branch
          %2350 = sbr.rel (%p2348) target = $region68
        $region67: #{tpu_custom_call.1} parent=59 // pred_region
          %s2352 = ssub.s32 4096, 4096
          %2353 = vsyncadd %s2344, %s2352
          %s2354 = smul.addr %s27, 32
          %s2355 = smul.addr %s2354, 128
          %s2356 = scalar_lea.hbm %s10, %s2355
          %s2357 = sshll.u32 %s2347, 4
          %s2358 = int_to_ptr.vmem [resolvable:$true] %s2357
          %2363 = dma.vmem_to_hbm [thread:$0]  %s2358, 4096, %s2356, %s2344, 128, 128, 8
        $region68: #{tpu_custom_call.1} parent=59 // pred_fallthru
          _
      $region60: #{tpu_custom_call.1} parent=5 // pred_fallthru
        _
      %p2364 = scmp.le.s32.totalorder 2, %s22
      // Predicated region
      $region69: #{tpu_custom_call.1} parent=5 // pred_check
        %p2365 = pneg %p2364
      $region70: #{tpu_custom_call.1} parent=5 // pred_check_branch
        %2367 = sbr.rel (%p2365) target = $region72
      $region71: #{tpu_custom_call.1} parent=5 // pred_region
        %s2368 = ssub.s32 %s22, 2
        // Predicated region
        $region73: #{tpu_custom_call.1} parent=71 // pred_check
          %p2369 = pneg %p266
        $region74: #{tpu_custom_call.1} parent=71 // pred_check_branch
          %2371 = sbr.rel (%p2369) target = $region76
        $region75: #{tpu_custom_call.1} parent=71 // pred_region
          %s2372 = sand.u32 %s251, 1
          %s2373 = scalar_lea.sflag [#allocation5], %s2372
          %s2374 = sand.u32 %s251, 1
          %s2375 = smul.addr %s2374, 256
          %s2376 = scalar_lea.vmem [#allocation6], %s2375
          %2377 = dma.done %s2373, 4096
        $region76: #{tpu_custom_call.1} parent=71 // pred_fallthru
          _
      $region72: #{tpu_custom_call.1} parent=5 // pred_fallthru
        _
    $region6: #{tpu_custom_call.1} parent=1 // loop_footer
      %s26 = sadd.s32 1, %s22
    $region7: #{tpu_custom_call.1} parent=1 // loop_footer_branch
      %21 = sbr.rel target = $region3
    $region8: #{tpu_custom_call.1} parent=1 // loop_exit
      _
    %2378 = vsyncpa [#allocation4], 1
    %s2379 = scalar_lea.sflag [#allocation4], 1
    %2380 = vsyncpa %s2379, 1
    %2381 = vsyncpa [#allocation5], 1
    %s2382 = scalar_lea.sflag [#allocation5], 1
    %2383 = vsyncpa %s2382, 1

</llo_original>
